<compile_context>
chip_gen: v7x
topology: tpu7x:2x2x1
jax: 0.10.0
libtpu: 0.0.40
codegen_flags: <defaults>
</compile_context>

<pallas_src>
import functools
import math

import jax
import jax.numpy as jnp
import numpy as np
from jax import lax
from jax.experimental import pallas as pl
from jax.experimental.pallas import tpu as pltpu


# ------------------------------ kernel ------------------------------------ #

def _layernorm(v, gamma, beta, eps=1e-5):
    mu = jnp.mean(v, axis=-1, keepdims=True)
    var = jnp.mean((v - mu) ** 2, axis=-1, keepdims=True)
    return (v - mu) * lax.rsqrt(var + eps) * gamma + beta


def _gelu_exact(v):
    # nn.GELU() default (erf-based, not the tanh approximation).
    return 0.5 * v * (1.0 + lax.erf(v * (1.0 / math.sqrt(2.0))))


def _split_heads(x2d, n_heads, d):
    # [S, H*D] -> [H, S, D] via a leading-dim stack of static lane slices
    # (avoids an unsupported middle-dim jnp.transpose; one tiny relayout, and
    # the big matmuls / softmax stay head-batched).
    return jnp.stack([x2d[:, h * d:(h + 1) * d] for h in range(n_heads)], axis=0)


def gpt_decoder_layer_kernel(n_heads,
                             x_ref, mask_ref,
                             g1_ref, b1_ref, g2_ref, b2_ref,
                             wqkv_ref, wo_ref,
                             w1_ref, bb1_ref, w2_ref, bb2_ref,
                             o_ref):
    """One batch element per grid step; whole layer fused in VMEM."""
    x = x_ref[...]                              # [S, E] f32
    add_mask = mask_ref[...]                    # [S, S] additive (0 / -1e30) f32

    A = wqkv_ref.shape[1] // 3
    D = A // n_heads
    mm_dtype = wqkv_ref.dtype                   # MXU operand dtype (f32 / bf16)

    # ---- norm1 (f32) ----
    nx = _layernorm(x, g1_ref[...], b1_ref[...])

    # ---- multi-head self-attention ----
    # Fused QKV: one [S,E] @ [E,3A] MXU matmul (1/sqrt(d_k) pre-folded into Wq).
    qkv = jnp.dot(nx.astype(mm_dtype), wqkv_ref[...],
                  preferred_element_type=jnp.float32)        # [S, 3A] f32
    q = _split_heads(qkv[:, :A], n_heads, D)                 # [H, S, D]
    k = _split_heads(qkv[:, A:2 * A], n_heads, D)            # [H, S, D]
    v = _split_heads(qkv[:, 2 * A:], n_heads, D)             # [H, S, D]

    # One score matmul, one mask add and one softmax for all heads.
    s = jnp.einsum('hqd,hkd->hqk', q.astype(mm_dtype), k.astype(mm_dtype),
                   preferred_element_type=jnp.float32)       # [H, S, S] f32
    s = s + add_mask[None, :, :]                             # additive mask
    m = jnp.max(s, axis=-1, keepdims=True)
    e = jnp.exp(s - m)
    denom = jnp.sum(e, axis=-1, keepdims=True)
    p = e * pl.reciprocal(denom, approx=True)                # EUP divide
    ah = jnp.einsum('hqk,hkd->hqd', p.astype(mm_dtype), v.astype(mm_dtype),
                    preferred_element_type=jnp.float32)      # [H, S, D] f32

    # Head concat in registers (no VMEM scratch round-trip), one Wo matmul.
    cat = jnp.concatenate([ah[h] for h in range(n_heads)], axis=-1)  # [S, A]
    attn = jnp.dot(cat.astype(mm_dtype), wo_ref[...],
                   preferred_element_type=jnp.float32)       # [S, E]
    x1 = x + attn                               # residual 1 (dropout = identity)

    # ---- norm2 + feed-forward (element-wise math in f32) ----
    nx2 = _layernorm(x1, g2_ref[...], b2_ref[...])
    h1 = jnp.dot(nx2.astype(mm_dtype), w1_ref[...],
                 preferred_element_type=jnp.float32) + bb1_ref[...]
    h1 = _gelu_exact(h1)
    ff = jnp.dot(h1.astype(mm_dtype), w2_ref[...],
                 preferred_element_type=jnp.float32) + bb2_ref[...]

    o_ref[...] = (x1 + ff).astype(o_ref.dtype)  # residual 2


# ------------------------------ wrapper ------------------------------------ #

def gpt_decoder_layer(x, mask, params, n_heads, matmul_dtype=jnp.float32):
    B, S, E = x.shape
    A = params["wq"].shape[1]
    F = params["w1"].shape[1]
    assert A % n_heads == 0
    D = A // n_heads

    # Host-side (free): fold 1/sqrt(d_k) into Wq, fuse Q|K|V into one [E, 3A]
    # weight, and cast matmul weights to the requested MXU operand dtype.
    wqkv = jnp.concatenate(
        [params["wq"] * (1.0 / math.sqrt(D)), params["wk"], params["wv"]],
        axis=1).astype(matmul_dtype)                          # [E, 3A]
    wo = params["wo"].astype(matmul_dtype)
    w1 = params["w1"].astype(matmul_dtype)
    w2 = params["w2"].astype(matmul_dtype)

    # Additive mask: 0 where attended, -1e30 where masked (no -inf -> NaN hazard).
    add_mask = jnp.where(mask != 0, -1e30, 0.0).astype(jnp.float32)

    # One batch element per grid step (leading batch dim squeezed in-kernel).
    batched = lambda shape: pl.BlockSpec((None, *shape), lambda b: (b, 0, 0))
    # Parameters resident across all steps (constant block index => no re-DMA).
    resident = lambda shape: pl.BlockSpec(shape, lambda b: (0, 0))

    grid_spec = pltpu.PrefetchScalarGridSpec(
        num_scalar_prefetch=0,
        grid=(B,),
        in_specs=[
            batched((S, E)),                     # x
            resident((S, S)),                    # additive mask (f32)
            resident((1, E)), resident((1, E)),  # norm1 gamma/beta
            resident((1, E)), resident((1, E)),  # norm2 gamma/beta
            resident((E, 3 * A)),                # fused Wqkv (pre-T, Wq scaled)
            resident((A, E)),                    # Wo (pre-T)
            resident((E, F)), resident((1, F)),  # W1 (pre-T), b1
            resident((F, E)), resident((1, E)),  # W2 (pre-T), b2
        ],
        out_specs=batched((S, E)),
    )

    kernel = functools.partial(gpt_decoder_layer_kernel, n_heads)
    return pl.pallas_call(
        kernel,
        out_shape=jax.ShapeDtypeStruct((B, S, E), x.dtype),
        grid_spec=grid_spec,
        compiler_params=pltpu.CompilerParams(
            dimension_semantics=("parallel",),       # uses both TCs on v7x
            vmem_limit_bytes=32 * 1024 * 1024),
    )(x, add_mask,
      params["g1"], params["b1"], params["g2"], params["b2"],
      wqkv, wo, w1, params["bb1"], w2, params["bb2"])


# --------------------------- pure-JAX reference ----------------------------- #

def reference(x, mask, params, n_heads):
    """Matches the PyTorch module semantics exactly (f32, -inf masked_fill)."""
    def layernorm(v, g, b):
        mu = v.mean(-1, keepdims=True)
        var = ((v - mu) ** 2).mean(-1, keepdims=True)
        return (v - mu) / jnp.sqrt(var + 1e-5) * g + b

    g1, b1 = params["g1"][0], params["b1"][0]
    g2, b2 = params["g2"][0], params["b2"][0]
    wq, wk, wv, wo = params["wq"], params["wk"], params["wv"], params["wo"]
    w1, bb1, w2, bb2 = params["w1"], params["bb1"][0], params["w2"], params["bb2"][0]

    nx = layernorm(x, g1, b1)
    A = wq.shape[1]
    D = A // n_heads
    heads = []
    mb = mask[None] != 0
    for h in range(n_heads):
        sl = slice(h * D, (h + 1) * D)
        q = nx @ wq[:, sl]
        k = nx @ wk[:, sl]
        v = nx @ wv[:, sl]
        prod = jnp.einsum("bqd,bkd->bqk", q, k)
        prod = jnp.where(mb, -jnp.inf, prod) / math.sqrt(D)
        p = jax.nn.softmax(prod, axis=-1)
        heads.append(jnp.einsum("bqk,bkd->bqd", p, v))
    attn = jnp.concatenate(heads, axis=-1) @ wo
    x = x + attn
    nx2 = layernorm(x, g2, b2)
    h1 = nx2 @ w1 + bb1
    h1 = 0.5 * h1 * (1.0 + lax.erf(h1 / math.sqrt(2.0)))
    ff = h1 @ w2 + bb2
    return x + ff


# ------------------------------- main --------------------------------------- #

if __name__ == "__main__":
    B, S, E = 2, 8, 32
    attention_size = 32
    n_heads = 4
    F = 4 * E

    key = jax.random.PRNGKey(0)
    ks = jax.random.split(key, 10)

    def init(k, shape, scale=0.05):
        return jax.random.normal(k, shape, jnp.float32) * scale

    params = {
        # LayerNorm params (torch default: weight=1, bias=0)
        "g1": jnp.ones((1, E), jnp.float32),
        "b1": jnp.zeros((1, E), jnp.float32),
        "g2": jnp.ones((1, E), jnp.float32),
        "b2": jnp.zeros((1, E), jnp.float32),
        # attention projection weights (pre-transposed: y = x @ W)
        "wq": init(ks[0], (E, attention_size)),
        "wk": init(ks[1], (E, attention_size)),
        "wv": init(ks[2], (E, attention_size)),
        "wo": init(ks[3], (attention_size, E)),
        # feed-forward (pre-transposed)
        "w1": init(ks[4], (E, F)),
        "bb1": init(ks[5], (1, F)),
        "w2": init(ks[6], (F, E)),
        "bb2": init(ks[7], (1, E)),
    }

    x = jax.random.normal(ks[8], (B, S, E), jnp.float32)
    # causal mask: nonzero above the diagonal (positions masked out)
    mask = jnp.triu(jnp.ones((S, S), jnp.int32), k=1)

    # f32 matmul operands here to match the PyTorch module's numerics; pass
    # matmul_dtype=jnp.bfloat16 on v6e/v7x at real sizes for MXU throughput.
    out = gpt_decoder_layer(x, mask, params, n_heads, matmul_dtype=jnp.float32)
    out = jax.block_until_ready(out)

    ref = jax.block_until_ready(reference(x, mask, params, n_heads))
    np.testing.assert_allclose(np.asarray(out), np.asarray(ref),
                               rtol=2e-3, atol=2e-3)
    print("KERNEL_OK")
</pallas_src>

<mosaic_0001>
module attributes {stable_mosaic.version = 11 : i64} {
  func.func @gpt_decoder_layer_kernel(%arg0: i32, %arg1: memref<1x8x32xf32, #tpu.memory_space<vmem>>, %arg2: memref<8x8xf32, #tpu.memory_space<vmem>>, %arg3: memref<1x32xf32, #tpu.memory_space<vmem>>, %arg4: memref<1x32xf32, #tpu.memory_space<vmem>>, %arg5: memref<1x32xf32, #tpu.memory_space<vmem>>, %arg6: memref<1x32xf32, #tpu.memory_space<vmem>>, %arg7: memref<32x96xf32, #tpu.memory_space<vmem>>, %arg8: memref<32x32xf32, #tpu.memory_space<vmem>>, %arg9: memref<32x128xf32, #tpu.memory_space<vmem>>, %arg10: memref<1x128xf32, #tpu.memory_space<vmem>>, %arg11: memref<128x32xf32, #tpu.memory_space<vmem>>, %arg12: memref<1x32xf32, #tpu.memory_space<vmem>>, %arg13: memref<1x8x32xf32, #tpu.memory_space<vmem>>) attributes {dimension_semantics = [#tpu.dimension_semantics<parallel>], iteration_bounds = array<i64: 2>, scalar_prefetch = 0 : i64, scratch_operands = 0 : i64, tpu.core_type = #tpu.core_type<tc>, window_params = [{transform_indices = @transform_0, window_bounds = array<i64: 1, 8, 32>}, {pipeline_mode = #tpu.pipeline_mode<synchronous>, transform_indices = @transform_1, window_bounds = array<i64: 8, 8>}, {pipeline_mode = #tpu.pipeline_mode<synchronous>, transform_indices = @transform_2, window_bounds = array<i64: 1, 32>}, {pipeline_mode = #tpu.pipeline_mode<synchronous>, transform_indices = @transform_3, window_bounds = array<i64: 1, 32>}, {pipeline_mode = #tpu.pipeline_mode<synchronous>, transform_indices = @transform_4, window_bounds = array<i64: 1, 32>}, {pipeline_mode = #tpu.pipeline_mode<synchronous>, transform_indices = @transform_5, window_bounds = array<i64: 1, 32>}, {pipeline_mode = #tpu.pipeline_mode<synchronous>, transform_indices = @transform_6, window_bounds = array<i64: 32, 96>}, {pipeline_mode = #tpu.pipeline_mode<synchronous>, transform_indices = @transform_7, window_bounds = array<i64: 32, 32>}, {pipeline_mode = #tpu.pipeline_mode<synchronous>, transform_indices = @transform_8, window_bounds = array<i64: 32, 128>}, {pipeline_mode = #tpu.pipeline_mode<synchronous>, transform_indices = @transform_9, window_bounds = array<i64: 1, 128>}, {pipeline_mode = #tpu.pipeline_mode<synchronous>, transform_indices = @transform_10, window_bounds = array<i64: 128, 32>}, {pipeline_mode = #tpu.pipeline_mode<synchronous>, transform_indices = @transform_11, window_bounds = array<i64: 1, 32>}, {transform_indices = @transform_12, window_bounds = array<i64: 1, 8, 32>}]} {
    %c0 = arith.constant 0 : index
    %c0_0 = arith.constant 0 : index
    %c0_1 = arith.constant 0 : index
    %0 = vector.load %arg1[%c0, %c0_0, %c0_1] : memref<1x8x32xf32, #tpu.memory_space<vmem>>, vector<1x8x32xf32>
    %1 = vector.shape_cast %0 : vector<1x8x32xf32> to vector<8x32xf32>
    %c0_2 = arith.constant 0 : index
    %c0_3 = arith.constant 0 : index
    %2 = vector.load %arg2[%c0_2, %c0_3] : memref<8x8xf32, #tpu.memory_space<vmem>>, vector<8x8xf32>
    %c0_4 = arith.constant 0 : index
    %c0_5 = arith.constant 0 : index
    %3 = vector.load %arg3[%c0_4, %c0_5] : memref<1x32xf32, #tpu.memory_space<vmem>>, vector<1x32xf32>
    %c0_6 = arith.constant 0 : index
    %c0_7 = arith.constant 0 : index
    %4 = vector.load %arg4[%c0_6, %c0_7] : memref<1x32xf32, #tpu.memory_space<vmem>>, vector<1x32xf32>
    %cst = arith.constant dense<0.000000e+00> : vector<8xf32>
    %5 = vector.multi_reduction <add>, %1, %cst [1] : vector<8x32xf32> to vector<8xf32>
    %6 = vector.shape_cast %5 : vector<8xf32> to vector<8x1xf32>
    %cst_8 = arith.constant 3.200000e+01 : f32
    %7 = vector.broadcast %cst_8 : f32 to vector<8x1xf32>
    %8 = arith.divf %6, %7 : vector<8x1xf32>
    %9 = vector.broadcast %8 : vector<8x1xf32> to vector<8x32xf32>
    %10 = arith.subf %1, %9 : vector<8x32xf32>
    %11 = arith.mulf %10, %10 : vector<8x32xf32>
    %cst_9 = arith.constant dense<0.000000e+00> : vector<8xf32>
    %12 = vector.multi_reduction <add>, %11, %cst_9 [1] : vector<8x32xf32> to vector<8xf32>
    %13 = vector.shape_cast %12 : vector<8xf32> to vector<8x1xf32>
    %cst_10 = arith.constant 3.200000e+01 : f32
    %14 = vector.broadcast %cst_10 : f32 to vector<8x1xf32>
    %15 = arith.divf %13, %14 : vector<8x1xf32>
    %16 = vector.broadcast %8 : vector<8x1xf32> to vector<8x32xf32>
    %17 = arith.subf %1, %16 : vector<8x32xf32>
    %cst_11 = arith.constant 9.99999974E-6 : f32
    %18 = vector.broadcast %cst_11 : f32 to vector<8x1xf32>
    %19 = arith.addf %15, %18 : vector<8x1xf32>
    %20 = math.rsqrt %19 : vector<8x1xf32>
    %21 = vector.broadcast %20 : vector<8x1xf32> to vector<8x32xf32>
    %22 = arith.mulf %17, %21 : vector<8x32xf32>
    %23 = vector.broadcast %3 : vector<1x32xf32> to vector<8x32xf32>
    %24 = arith.mulf %22, %23 : vector<8x32xf32>
    %25 = vector.broadcast %4 : vector<1x32xf32> to vector<8x32xf32>
    %26 = arith.addf %24, %25 : vector<8x32xf32>
    %c0_12 = arith.constant 0 : index
    %c0_13 = arith.constant 0 : index
    %27 = vector.load %arg7[%c0_12, %c0_13] : memref<32x96xf32, #tpu.memory_space<vmem>>, vector<32x96xf32>
    %cst_14 = arith.constant dense<0.000000e+00> : vector<8x96xf32>
    %28 = tpu.matmul %26, %27, %cst_14 {dimension_numbers = #tpu.dot_dimension_numbers<[1], [0], [0], [1], [0, 0, 1, 1], [], []>} : vector<8x32xf32>, vector<32x96xf32>, vector<8x96xf32> -> vector<8x96xf32>
    %29 = vector.extract_strided_slice %28 {offsets = [0, 0], sizes = [8, 32], strides = [1, 1]} : vector<8x96xf32> to vector<8x32xf32>
    %30 = vector.extract_strided_slice %29 {offsets = [0, 0], sizes = [8, 8], strides = [1, 1]} : vector<8x32xf32> to vector<8x8xf32>
    %31 = vector.extract_strided_slice %29 {offsets = [0, 8], sizes = [8, 8], strides = [1, 1]} : vector<8x32xf32> to vector<8x8xf32>
    %32 = vector.extract_strided_slice %29 {offsets = [0, 16], sizes = [8, 8], strides = [1, 1]} : vector<8x32xf32> to vector<8x8xf32>
    %33 = vector.extract_strided_slice %29 {offsets = [0, 24], sizes = [8, 8], strides = [1, 1]} : vector<8x32xf32> to vector<8x8xf32>
    %34 = vector.shape_cast %30 : vector<8x8xf32> to vector<1x8x8xf32>
    %35 = vector.shape_cast %31 : vector<8x8xf32> to vector<1x8x8xf32>
    %36 = vector.shape_cast %32 : vector<8x8xf32> to vector<1x8x8xf32>
    %37 = vector.shape_cast %33 : vector<8x8xf32> to vector<1x8x8xf32>
    %38 = tpu.concatenate %34, %35, %36, %37 in 0 : vector<1x8x8xf32>, vector<1x8x8xf32>, vector<1x8x8xf32>, vector<1x8x8xf32> -> vector<4x8x8xf32>
    %39 = vector.extract_strided_slice %28 {offsets = [0, 32], sizes = [8, 32], strides = [1, 1]} : vector<8x96xf32> to vector<8x32xf32>
    %40 = vector.extract_strided_slice %39 {offsets = [0, 0], sizes = [8, 8], strides = [1, 1]} : vector<8x32xf32> to vector<8x8xf32>
    %41 = vector.extract_strided_slice %39 {offsets = [0, 8], sizes = [8, 8], strides = [1, 1]} : vector<8x32xf32> to vector<8x8xf32>
    %42 = vector.extract_strided_slice %39 {offsets = [0, 16], sizes = [8, 8], strides = [1, 1]} : vector<8x32xf32> to vector<8x8xf32>
    %43 = vector.extract_strided_slice %39 {offsets = [0, 24], sizes = [8, 8], strides = [1, 1]} : vector<8x32xf32> to vector<8x8xf32>
    %44 = vector.shape_cast %40 : vector<8x8xf32> to vector<1x8x8xf32>
    %45 = vector.shape_cast %41 : vector<8x8xf32> to vector<1x8x8xf32>
    %46 = vector.shape_cast %42 : vector<8x8xf32> to vector<1x8x8xf32>
    %47 = vector.shape_cast %43 : vector<8x8xf32> to vector<1x8x8xf32>
    %48 = tpu.concatenate %44, %45, %46, %47 in 0 : vector<1x8x8xf32>, vector<1x8x8xf32>, vector<1x8x8xf32>, vector<1x8x8xf32> -> vector<4x8x8xf32>
    %49 = vector.extract_strided_slice %28 {offsets = [0, 64], sizes = [8, 32], strides = [1, 1]} : vector<8x96xf32> to vector<8x32xf32>
    %50 = vector.extract_strided_slice %49 {offsets = [0, 0], sizes = [8, 8], strides = [1, 1]} : vector<8x32xf32> to vector<8x8xf32>
    %51 = vector.extract_strided_slice %49 {offsets = [0, 8], sizes = [8, 8], strides = [1, 1]} : vector<8x32xf32> to vector<8x8xf32>
    %52 = vector.extract_strided_slice %49 {offsets = [0, 16], sizes = [8, 8], strides = [1, 1]} : vector<8x32xf32> to vector<8x8xf32>
    %53 = vector.extract_strided_slice %49 {offsets = [0, 24], sizes = [8, 8], strides = [1, 1]} : vector<8x32xf32> to vector<8x8xf32>
    %54 = vector.shape_cast %50 : vector<8x8xf32> to vector<1x8x8xf32>
    %55 = vector.shape_cast %51 : vector<8x8xf32> to vector<1x8x8xf32>
    %56 = vector.shape_cast %52 : vector<8x8xf32> to vector<1x8x8xf32>
    %57 = vector.shape_cast %53 : vector<8x8xf32> to vector<1x8x8xf32>
    %58 = tpu.concatenate %54, %55, %56, %57 in 0 : vector<1x8x8xf32>, vector<1x8x8xf32>, vector<1x8x8xf32>, vector<1x8x8xf32> -> vector<4x8x8xf32>
    "tpu.trace_start"() <{level = 10 : i32, message = "hqd,hkd->hqk"}> : () -> ()
    %cst_15 = arith.constant dense<0.000000e+00> : vector<4x8x8xf32>
    %59 = tpu.matmul %38, %48, %cst_15 {dimension_numbers = #tpu.dot_dimension_numbers<[2], [2], [1], [1], [0, 0, 0, 1, 1, 1], [0], [0]>} : vector<4x8x8xf32>, vector<4x8x8xf32>, vector<4x8x8xf32> -> vector<4x8x8xf32>
    "tpu.trace_stop"() : () -> ()
    %60 = vector.shape_cast %2 : vector<8x8xf32> to vector<1x8x8xf32>
    %61 = vector.broadcast %60 : vector<1x8x8xf32> to vector<4x8x8xf32>
    %62 = arith.addf %59, %61 : vector<4x8x8xf32>
    %cst_16 = arith.constant dense<0xFF800000> : vector<4x8xf32>
    %63 = vector.multi_reduction <maximumf>, %62, %cst_16 [2] : vector<4x8x8xf32> to vector<4x8xf32>
    %64 = vector.shape_cast %63 : vector<4x8xf32> to vector<4x8x1xf32>
    %65 = vector.broadcast %64 : vector<4x8x1xf32> to vector<4x8x8xf32>
    %66 = arith.subf %62, %65 : vector<4x8x8xf32>
    %67 = math.exp %66 : vector<4x8x8xf32>
    %cst_17 = arith.constant dense<0.000000e+00> : vector<4x8xf32>
    %68 = vector.multi_reduction <add>, %67, %cst_17 [2] : vector<4x8x8xf32> to vector<4x8xf32>
    %69 = vector.shape_cast %68 : vector<4x8xf32> to vector<4x8x1xf32>
    %70 = tpu.reciprocal %69 {approx = true} : vector<4x8x1xf32> -> vector<4x8x1xf32>
    %71 = vector.broadcast %70 : vector<4x8x1xf32> to vector<4x8x8xf32>
    %72 = arith.mulf %67, %71 : vector<4x8x8xf32>
    "tpu.trace_start"() <{level = 10 : i32, message = "hqk,hkd->hqd"}> : () -> ()
    %cst_18 = arith.constant dense<0.000000e+00> : vector<4x8x8xf32>
    %73 = tpu.matmul %72, %58, %cst_18 {dimension_numbers = #tpu.dot_dimension_numbers<[2], [1], [1], [2], [0, 0, 0, 1, 1, 2], [0], [0]>} : vector<4x8x8xf32>, vector<4x8x8xf32>, vector<4x8x8xf32> -> vector<4x8x8xf32>
    "tpu.trace_stop"() : () -> ()
    %74 = vector.extract_strided_slice %73 {offsets = [0, 0, 0], sizes = [1, 8, 8], strides = [1, 1, 1]} : vector<4x8x8xf32> to vector<1x8x8xf32>
    %75 = vector.shape_cast %74 : vector<1x8x8xf32> to vector<8x8xf32>
    %76 = vector.extract_strided_slice %73 {offsets = [1, 0, 0], sizes = [1, 8, 8], strides = [1, 1, 1]} : vector<4x8x8xf32> to vector<1x8x8xf32>
    %77 = vector.shape_cast %76 : vector<1x8x8xf32> to vector<8x8xf32>
    %78 = vector.extract_strided_slice %73 {offsets = [2, 0, 0], sizes = [1, 8, 8], strides = [1, 1, 1]} : vector<4x8x8xf32> to vector<1x8x8xf32>
    %79 = vector.shape_cast %78 : vector<1x8x8xf32> to vector<8x8xf32>
    %80 = vector.extract_strided_slice %73 {offsets = [3, 0, 0], sizes = [1, 8, 8], strides = [1, 1, 1]} : vector<4x8x8xf32> to vector<1x8x8xf32>
    %81 = vector.shape_cast %80 : vector<1x8x8xf32> to vector<8x8xf32>
    %82 = tpu.concatenate %75, %77, %79, %81 in 1 : vector<8x8xf32>, vector<8x8xf32>, vector<8x8xf32>, vector<8x8xf32> -> vector<8x32xf32>
    %c0_19 = arith.constant 0 : index
    %c0_20 = arith.constant 0 : index
    %83 = vector.load %arg8[%c0_19, %c0_20] : memref<32x32xf32, #tpu.memory_space<vmem>>, vector<32x32xf32>
    %cst_21 = arith.constant dense<0.000000e+00> : vector<8x32xf32>
    %84 = tpu.matmul %82, %83, %cst_21 {dimension_numbers = #tpu.dot_dimension_numbers<[1], [0], [0], [1], [0, 0, 1, 1], [], []>} : vector<8x32xf32>, vector<32x32xf32>, vector<8x32xf32> -> vector<8x32xf32>
    %85 = arith.addf %1, %84 : vector<8x32xf32>
    %c0_22 = arith.constant 0 : index
    %c0_23 = arith.constant 0 : index
    %86 = vector.load %arg5[%c0_22, %c0_23] : memref<1x32xf32, #tpu.memory_space<vmem>>, vector<1x32xf32>
    %c0_24 = arith.constant 0 : index
    %c0_25 = arith.constant 0 : index
    %87 = vector.load %arg6[%c0_24, %c0_25] : memref<1x32xf32, #tpu.memory_space<vmem>>, vector<1x32xf32>
    %cst_26 = arith.constant dense<0.000000e+00> : vector<8xf32>
    %88 = vector.multi_reduction <add>, %85, %cst_26 [1] : vector<8x32xf32> to vector<8xf32>
    %89 = vector.shape_cast %88 : vector<8xf32> to vector<8x1xf32>
    %cst_27 = arith.constant 3.200000e+01 : f32
    %90 = vector.broadcast %cst_27 : f32 to vector<8x1xf32>
    %91 = arith.divf %89, %90 : vector<8x1xf32>
    %92 = vector.broadcast %91 : vector<8x1xf32> to vector<8x32xf32>
    %93 = arith.subf %85, %92 : vector<8x32xf32>
    %94 = arith.mulf %93, %93 : vector<8x32xf32>
    %cst_28 = arith.constant dense<0.000000e+00> : vector<8xf32>
    %95 = vector.multi_reduction <add>, %94, %cst_28 [1] : vector<8x32xf32> to vector<8xf32>
    %96 = vector.shape_cast %95 : vector<8xf32> to vector<8x1xf32>
    %cst_29 = arith.constant 3.200000e+01 : f32
    %97 = vector.broadcast %cst_29 : f32 to vector<8x1xf32>
    %98 = arith.divf %96, %97 : vector<8x1xf32>
    %99 = vector.broadcast %91 : vector<8x1xf32> to vector<8x32xf32>
    %100 = arith.subf %85, %99 : vector<8x32xf32>
    %cst_30 = arith.constant 9.99999974E-6 : f32
    %101 = vector.broadcast %cst_30 : f32 to vector<8x1xf32>
    %102 = arith.addf %98, %101 : vector<8x1xf32>
    %103 = math.rsqrt %102 : vector<8x1xf32>
    %104 = vector.broadcast %103 : vector<8x1xf32> to vector<8x32xf32>
    %105 = arith.mulf %100, %104 : vector<8x32xf32>
    %106 = vector.broadcast %86 : vector<1x32xf32> to vector<8x32xf32>
    %107 = arith.mulf %105, %106 : vector<8x32xf32>
    %108 = vector.broadcast %87 : vector<1x32xf32> to vector<8x32xf32>
    %109 = arith.addf %107, %108 : vector<8x32xf32>
    %c0_31 = arith.constant 0 : index
    %c0_32 = arith.constant 0 : index
    %110 = vector.load %arg9[%c0_31, %c0_32] : memref<32x128xf32, #tpu.memory_space<vmem>>, vector<32x128xf32>
    %cst_33 = arith.constant dense<0.000000e+00> : vector<8x128xf32>
    %111 = tpu.matmul %109, %110, %cst_33 {dimension_numbers = #tpu.dot_dimension_numbers<[1], [0], [0], [1], [0, 0, 1, 1], [], []>} : vector<8x32xf32>, vector<32x128xf32>, vector<8x128xf32> -> vector<8x128xf32>
    %c0_34 = arith.constant 0 : index
    %c0_35 = arith.constant 0 : index
    %112 = vector.load %arg10[%c0_34, %c0_35] : memref<1x128xf32, #tpu.memory_space<vmem>>, vector<1x128xf32>
    %113 = vector.broadcast %112 : vector<1x128xf32> to vector<8x128xf32>
    %114 = arith.addf %111, %113 : vector<8x128xf32>
    %cst_36 = arith.constant 5.000000e-01 : f32
    %115 = vector.broadcast %cst_36 : f32 to vector<8x128xf32>
    %116 = arith.mulf %115, %114 : vector<8x128xf32>
    %cst_37 = arith.constant 0.707106769 : f32
    %117 = vector.broadcast %cst_37 : f32 to vector<8x128xf32>
    %118 = arith.mulf %114, %117 : vector<8x128xf32>
    %119 = math.erf %118 : vector<8x128xf32>
    %cst_38 = arith.constant 1.000000e+00 : f32
    %120 = vector.broadcast %cst_38 : f32 to vector<8x128xf32>
    %121 = arith.addf %120, %119 : vector<8x128xf32>
    %122 = arith.mulf %116, %121 : vector<8x128xf32>
    %c0_39 = arith.constant 0 : index
    %c0_40 = arith.constant 0 : index
    %123 = vector.load %arg11[%c0_39, %c0_40] : memref<128x32xf32, #tpu.memory_space<vmem>>, vector<128x32xf32>
    %cst_41 = arith.constant dense<0.000000e+00> : vector<8x32xf32>
    %124 = tpu.matmul %122, %123, %cst_41 {dimension_numbers = #tpu.dot_dimension_numbers<[1], [0], [0], [1], [0, 0, 1, 1], [], []>} : vector<8x128xf32>, vector<128x32xf32>, vector<8x32xf32> -> vector<8x32xf32>
    %c0_42 = arith.constant 0 : index
    %c0_43 = arith.constant 0 : index
    %125 = vector.load %arg12[%c0_42, %c0_43] : memref<1x32xf32, #tpu.memory_space<vmem>>, vector<1x32xf32>
    %126 = vector.broadcast %125 : vector<1x32xf32> to vector<8x32xf32>
    %127 = arith.addf %124, %126 : vector<8x32xf32>
    %128 = arith.addf %85, %127 : vector<8x32xf32>
    %c0_44 = arith.constant 0 : index
    %c0_45 = arith.constant 0 : index
    %c0_46 = arith.constant 0 : index
    %129 = vector.load %arg13[%c0_44, %c0_45, %c0_46] : memref<1x8x32xf32, #tpu.memory_space<vmem>>, vector<1x8x32xf32>
    %130 = vector.shape_cast %129 : vector<1x8x32xf32> to vector<8x32xf32>
    %131 = vector.shape_cast %128 : vector<8x32xf32> to vector<1x8x32xf32>
    tpu.vector_store %arg13[%c0_44, %c0_45, %c0_46], %131 {strides = array<i32>} : memref<1x8x32xf32, #tpu.memory_space<vmem>>, vector<1x8x32xf32>,
    return
  }
  func.func @transform_0(%arg0: i32) -> (i32, i32, i32) {
    %c0_i32 = arith.constant 0 : i32
    %c0_i32_0 = arith.constant 0 : i32
    %c0_i32_1 = arith.constant 0 : i32
    return %arg0, %c0_i32, %c0_i32_0 : i32, i32, i32
  }
  func.func @transform_1(%arg0: i32) -> (i32, i32) {
    %c0_i32 = arith.constant 0 : i32
    %c0_i32_0 = arith.constant 0 : i32
    %c0_i32_1 = arith.constant 0 : i32
    return %c0_i32, %c0_i32_0 : i32, i32
  }
  func.func @transform_2(%arg0: i32) -> (i32, i32) {
    %c0_i32 = arith.constant 0 : i32
    %c0_i32_0 = arith.constant 0 : i32
    %c0_i32_1 = arith.constant 0 : i32
    return %c0_i32, %c0_i32_0 : i32, i32
  }
  func.func @transform_3(%arg0: i32) -> (i32, i32) {
    %c0_i32 = arith.constant 0 : i32
    %c0_i32_0 = arith.constant 0 : i32
    %c0_i32_1 = arith.constant 0 : i32
    return %c0_i32, %c0_i32_0 : i32, i32
  }
  func.func @transform_4(%arg0: i32) -> (i32, i32) {
    %c0_i32 = arith.constant 0 : i32
    %c0_i32_0 = arith.constant 0 : i32
    %c0_i32_1 = arith.constant 0 : i32
    return %c0_i32, %c0_i32_0 : i32, i32
  }
  func.func @transform_5(%arg0: i32) -> (i32, i32) {
    %c0_i32 = arith.constant 0 : i32
    %c0_i32_0 = arith.constant 0 : i32
    %c0_i32_1 = arith.constant 0 : i32
    return %c0_i32, %c0_i32_0 : i32, i32
  }
  func.func @transform_6(%arg0: i32) -> (i32, i32) {
    %c0_i32 = arith.constant 0 : i32
    %c0_i32_0 = arith.constant 0 : i32
    %c0_i32_1 = arith.constant 0 : i32
    return %c0_i32, %c0_i32_0 : i32, i32
  }
  func.func @transform_7(%arg0: i32) -> (i32, i32) {
    %c0_i32 = arith.constant 0 : i32
    %c0_i32_0 = arith.constant 0 : i32
    %c0_i32_1 = arith.constant 0 : i32
    return %c0_i32, %c0_i32_0 : i32, i32
  }
  func.func @transform_8(%arg0: i32) -> (i32, i32) {
    %c0_i32 = arith.constant 0 : i32
    %c0_i32_0 = arith.constant 0 : i32
    %c0_i32_1 = arith.constant 0 : i32
    return %c0_i32, %c0_i32_0 : i32, i32
  }
  func.func @transform_9(%arg0: i32) -> (i32, i32) {
    %c0_i32 = arith.constant 0 : i32
    %c0_i32_0 = arith.constant 0 : i32
    %c0_i32_1 = arith.constant 0 : i32
    return %c0_i32, %c0_i32_0 : i32, i32
  }
  func.func @transform_10(%arg0: i32) -> (i32, i32) {
    %c0_i32 = arith.constant 0 : i32
    %c0_i32_0 = arith.constant 0 : i32
    %c0_i32_1 = arith.constant 0 : i32
    return %c0_i32, %c0_i32_0 : i32, i32
  }
  func.func @transform_11(%arg0: i32) -> (i32, i32) {
    %c0_i32 = arith.constant 0 : i32
    %c0_i32_0 = arith.constant 0 : i32
    %c0_i32_1 = arith.constant 0 : i32
    return %c0_i32, %c0_i32_0 : i32, i32
  }
  func.func @transform_12(%arg0: i32) -> (i32, i32, i32) {
    %c0_i32 = arith.constant 0 : i32
    %c0_i32_0 = arith.constant 0 : i32
    %c0_i32_1 = arith.constant 0 : i32
    return %arg0, %c0_i32, %c0_i32_0 : i32, i32, i32
  }
}

</mosaic_0001>

<llo_original>
// kernel: tpu_custom_call.1
$region0: #{tpu_custom_call.1}
  #allocation0 [shape = 'u32[]', space=smem, size = 0x4, offset = 0x4, fixed_abs, tag = 'smem constant byte address 0x4 - core index']
  #allocation1 [shape = 'u32[144,128]{1,0:T(1,128)}', space=vmem, size = 0x12000, scoped, tag = 'internal scratch']
  %s0 = inlined_call_operand.vmem [shape: f32[2,8,32], index: 0, kind: input, shape index: {}]
  %s1 = inlined_call_operand.vmem [shape: f32[8,8], index: 1, kind: input, shape index: {}]
  %s2 = inlined_call_operand.vmem [shape: f32[1,32], index: 2, kind: input, shape index: {}]
  %s3 = inlined_call_operand.vmem [shape: f32[1,32], index: 3, kind: input, shape index: {}]
  %s4 = inlined_call_operand.vmem [shape: f32[1,32], index: 4, kind: input, shape index: {}]
  %s5 = inlined_call_operand.vmem [shape: f32[1,32], index: 5, kind: input, shape index: {}]
  %s6 = inlined_call_operand.vmem [shape: f32[32,96], index: 6, kind: input, shape index: {}]
  %s7 = inlined_call_operand.vmem [shape: f32[32,32], index: 7, kind: input, shape index: {}]
  %s8 = inlined_call_operand.vmem [shape: f32[32,128], index: 8, kind: input, shape index: {}]
  %s9 = inlined_call_operand.vmem [shape: f32[1,128], index: 9, kind: input, shape index: {}]
  %s10 = inlined_call_operand.vmem [shape: f32[128,32], index: 10, kind: input, shape index: {}]
  %s11 = inlined_call_operand.vmem [shape: f32[1,32], index: 11, kind: input, shape index: {}]
  %s12 = inlined_call_operand.hbm [shape: f32[2,8,32], index: 12, kind: output, shape index: {}]
  %s13 = sld [smem:[#allocation0]]
  $region81: #{tpu_custom_call.1} parent=0
    _
  %s15 = ssub.s32 1, %s13
  %s16 = scalar_select 0, %s15, %s13
  $region1: #{tpu_custom_call.1} parent=0
    #allocation2 [shape = 'u8[8192]{0}', space=vmem, size = 0x2000, scoped, tag = 'output window, operand 0']
    #allocation3 [shape = 's32[2]{0}', space=sflag, size = 0x8, scoped, tag = 'scoped memory for tpu_custom_call.1']
    %17 = vsyncpa [#allocation3], 0
    %s18 = scalar_lea.sflag [#allocation3], 1
    %19 = vsyncpa %s18, 0
    loop: start=0, step=1, limit=4
    $region2: #{tpu_custom_call.1} parent=1 // loop_pre_header
      _
    $region3: #{tpu_custom_call.1} parent=1 // loop_header
      %s21 = sphi 0, %s25
      %p22 = scmp.ge.s32.totalorder %s21, 4
      %s31 = sphi 0, %s33
      %s34 = sphi 0, %s31
      %s35 = sphi 0, %s34
      %s51 = sphi 0, %s35
      %s55 = sphi 0, %s55
      %s57 = sphi 0, %s55
      %s58 = sphi 0, %s57
      %s72 = sphi 0, %s58
      %s76 = sphi 0, %s76
      %s78 = sphi 0, %s76
      %s79 = sphi 0, %s78
      %s93 = sphi 0, %s79
      %s97 = sphi 0, %s97
      %s99 = sphi 0, %s97
      %s100 = sphi 0, %s99
      %s114 = sphi 0, %s100
      %s118 = sphi 0, %s118
      %s120 = sphi 0, %s118
      %s121 = sphi 0, %s120
      %s135 = sphi 0, %s121
      %s139 = sphi 0, %s139
      %s141 = sphi 0, %s139
      %s142 = sphi 0, %s141
      %s156 = sphi 0, %s142
      %s160 = sphi 0, %s160
      %s162 = sphi 0, %s160
      %s163 = sphi 0, %s162
      %s177 = sphi 0, %s163
      %s181 = sphi 0, %s181
      %s183 = sphi 0, %s181
      %s184 = sphi 0, %s183
      %s198 = sphi 0, %s184
      %s202 = sphi 0, %s202
      %s204 = sphi 0, %s202
      %s205 = sphi 0, %s204
      %s219 = sphi 0, %s205
      %s223 = sphi 0, %s223
      %s225 = sphi 0, %s223
      %s226 = sphi 0, %s225
      %s240 = sphi 0, %s226
      %s244 = sphi 0, %s244
      %s246 = sphi 0, %s244
      %s247 = sphi 0, %s246
      %s261 = sphi 0, %s247
      %s265 = sphi 0, %s265
      %s267 = sphi 0, %s265
      %s268 = sphi 0, %s267
      %s282 = sphi 0, %s268
      %s288 = sphi 0, %s290
      %s291 = sphi 0, %s288
      %s292 = sphi 0, %s291
      %s308 = sphi 0, %s292
    $region4: #{tpu_custom_call.1} parent=1 // loop_header_branch
      %24 = sbr.rel (%p22) target = $region8
    $region5: #{tpu_custom_call.1} parent=1 // loop_body
      %s26 = ssub.s32 %s21, 1
      %s27 = ssub.s32 %s21, 2
      %s28 = sadd.s32 %s21, 1
      %s29 = ssub.s32 %s21, %s28
      %p30 = scmp.eq.s32.totalorder %s29, 0
      %s32 = sadd.s32 %s31, 1
      %s33 = scalar_select %p30, %s31, %s32
      %p36 = pneg %p30
      %p37 = scmp.eq.s32.totalorder %s21, 1
      %p38 = por %p36, %p37
      %p39 = scmp.ne.s32.totalorder %s31, %s34
      %p40 = scmp.eq.s32.totalorder %s21, 0
      %p41 = por %p39, %p40
      %p42 = scmp.ne.s32.totalorder %s31, %s34
      %p43 = scmp.eq.s32.totalorder %s26, 1
      %p44 = por %p42, %p43
      %p45 = scmp.ne.s32.totalorder %s34, %s35
      %p46 = scmp.eq.s32.totalorder %s26, 0
      %p47 = por %p45, %p46
      %p48 = scmp.ne.s32.totalorder %s34, %s35
      %p49 = scmp.eq.s32.totalorder %s27, 1
      %p50 = por %p48, %p49
      %p52 = scmp.ne.s32.totalorder %s35, %s51
      %p53 = scmp.eq.s32.totalorder %s27, 0
      %p54 = por %p52, %p53
      %s56 = sadd.s32 %s55, 1
      %p59 = scmp.eq.s32.totalorder %s21, 1
      %p60 = scmp.ne.s32.totalorder %s55, %s57
      %p61 = scmp.eq.s32.totalorder %s21, 0
      %p62 = por %p60, %p61
      %p63 = scmp.ne.s32.totalorder %s55, %s57
      %p64 = scmp.eq.s32.totalorder %s26, 1
      %p65 = por %p63, %p64
      %p66 = scmp.ne.s32.totalorder %s57, %s58
      %p67 = scmp.eq.s32.totalorder %s26, 0
      %p68 = por %p66, %p67
      %p69 = scmp.ne.s32.totalorder %s57, %s58
      %p70 = scmp.eq.s32.totalorder %s27, 1
      %p71 = por %p69, %p70
      %p73 = scmp.ne.s32.totalorder %s58, %s72
      %p74 = scmp.eq.s32.totalorder %s27, 0
      %p75 = por %p73, %p74
      %s77 = sadd.s32 %s76, 1
      %p80 = scmp.eq.s32.totalorder %s21, 1
      %p81 = scmp.ne.s32.totalorder %s76, %s78
      %p82 = scmp.eq.s32.totalorder %s21, 0
      %p83 = por %p81, %p82
      %p84 = scmp.ne.s32.totalorder %s76, %s78
      %p85 = scmp.eq.s32.totalorder %s26, 1
      %p86 = por %p84, %p85
      %p87 = scmp.ne.s32.totalorder %s78, %s79
      %p88 = scmp.eq.s32.totalorder %s26, 0
      %p89 = por %p87, %p88
      %p90 = scmp.ne.s32.totalorder %s78, %s79
      %p91 = scmp.eq.s32.totalorder %s27, 1
      %p92 = por %p90, %p91
      %p94 = scmp.ne.s32.totalorder %s79, %s93
      %p95 = scmp.eq.s32.totalorder %s27, 0
      %p96 = por %p94, %p95
      %s98 = sadd.s32 %s97, 1
      %p101 = scmp.eq.s32.totalorder %s21, 1
      %p102 = scmp.ne.s32.totalorder %s97, %s99
      %p103 = scmp.eq.s32.totalorder %s21, 0
      %p104 = por %p102, %p103
      %p105 = scmp.ne.s32.totalorder %s97, %s99
      %p106 = scmp.eq.s32.totalorder %s26, 1
      %p107 = por %p105, %p106
      %p108 = scmp.ne.s32.totalorder %s99, %s100
      %p109 = scmp.eq.s32.totalorder %s26, 0
      %p110 = por %p108, %p109
      %p111 = scmp.ne.s32.totalorder %s99, %s100
      %p112 = scmp.eq.s32.totalorder %s27, 1
      %p113 = por %p111, %p112
      %p115 = scmp.ne.s32.totalorder %s100, %s114
      %p116 = scmp.eq.s32.totalorder %s27, 0
      %p117 = por %p115, %p116
      %s119 = sadd.s32 %s118, 1
      %p122 = scmp.eq.s32.totalorder %s21, 1
      %p123 = scmp.ne.s32.totalorder %s118, %s120
      %p124 = scmp.eq.s32.totalorder %s21, 0
      %p125 = por %p123, %p124
      %p126 = scmp.ne.s32.totalorder %s118, %s120
      %p127 = scmp.eq.s32.totalorder %s26, 1
      %p128 = por %p126, %p127
      %p129 = scmp.ne.s32.totalorder %s120, %s121
      %p130 = scmp.eq.s32.totalorder %s26, 0
      %p131 = por %p129, %p130
      %p132 = scmp.ne.s32.totalorder %s120, %s121
      %p133 = scmp.eq.s32.totalorder %s27, 1
      %p134 = por %p132, %p133
      %p136 = scmp.ne.s32.totalorder %s121, %s135
      %p137 = scmp.eq.s32.totalorder %s27, 0
      %p138 = por %p136, %p137
      %s140 = sadd.s32 %s139, 1
      %p143 = scmp.eq.s32.totalorder %s21, 1
      %p144 = scmp.ne.s32.totalorder %s139, %s141
      %p145 = scmp.eq.s32.totalorder %s21, 0
      %p146 = por %p144, %p145
      %p147 = scmp.ne.s32.totalorder %s139, %s141
      %p148 = scmp.eq.s32.totalorder %s26, 1
      %p149 = por %p147, %p148
      %p150 = scmp.ne.s32.totalorder %s141, %s142
      %p151 = scmp.eq.s32.totalorder %s26, 0
      %p152 = por %p150, %p151
      %p153 = scmp.ne.s32.totalorder %s141, %s142
      %p154 = scmp.eq.s32.totalorder %s27, 1
      %p155 = por %p153, %p154
      %p157 = scmp.ne.s32.totalorder %s142, %s156
      %p158 = scmp.eq.s32.totalorder %s27, 0
      %p159 = por %p157, %p158
      %s161 = sadd.s32 %s160, 1
      %p164 = scmp.eq.s32.totalorder %s21, 1
      %p165 = scmp.ne.s32.totalorder %s160, %s162
      %p166 = scmp.eq.s32.totalorder %s21, 0
      %p167 = por %p165, %p166
      %p168 = scmp.ne.s32.totalorder %s160, %s162
      %p169 = scmp.eq.s32.totalorder %s26, 1
      %p170 = por %p168, %p169
      %p171 = scmp.ne.s32.totalorder %s162, %s163
      %p172 = scmp.eq.s32.totalorder %s26, 0
      %p173 = por %p171, %p172
      %p174 = scmp.ne.s32.totalorder %s162, %s163
      %p175 = scmp.eq.s32.totalorder %s27, 1
      %p176 = por %p174, %p175
      %p178 = scmp.ne.s32.totalorder %s163, %s177
      %p179 = scmp.eq.s32.totalorder %s27, 0
      %p180 = por %p178, %p179
      %s182 = sadd.s32 %s181, 1
      %p185 = scmp.eq.s32.totalorder %s21, 1
      %p186 = scmp.ne.s32.totalorder %s181, %s183
      %p187 = scmp.eq.s32.totalorder %s21, 0
      %p188 = por %p186, %p187
      %p189 = scmp.ne.s32.totalorder %s181, %s183
      %p190 = scmp.eq.s32.totalorder %s26, 1
      %p191 = por %p189, %p190
      %p192 = scmp.ne.s32.totalorder %s183, %s184
      %p193 = scmp.eq.s32.totalorder %s26, 0
      %p194 = por %p192, %p193
      %p195 = scmp.ne.s32.totalorder %s183, %s184
      %p196 = scmp.eq.s32.totalorder %s27, 1
      %p197 = por %p195, %p196
      %p199 = scmp.ne.s32.totalorder %s184, %s198
      %p200 = scmp.eq.s32.totalorder %s27, 0
      %p201 = por %p199, %p200
      %s203 = sadd.s32 %s202, 1
      %p206 = scmp.eq.s32.totalorder %s21, 1
      %p207 = scmp.ne.s32.totalorder %s202, %s204
      %p208 = scmp.eq.s32.totalorder %s21, 0
      %p209 = por %p207, %p208
      %p210 = scmp.ne.s32.totalorder %s202, %s204
      %p211 = scmp.eq.s32.totalorder %s26, 1
      %p212 = por %p210, %p211
      %p213 = scmp.ne.s32.totalorder %s204, %s205
      %p214 = scmp.eq.s32.totalorder %s26, 0
      %p215 = por %p213, %p214
      %p216 = scmp.ne.s32.totalorder %s204, %s205
      %p217 = scmp.eq.s32.totalorder %s27, 1
      %p218 = por %p216, %p217
      %p220 = scmp.ne.s32.totalorder %s205, %s219
      %p221 = scmp.eq.s32.totalorder %s27, 0
      %p222 = por %p220, %p221
      %s224 = sadd.s32 %s223, 1
      %p227 = scmp.eq.s32.totalorder %s21, 1
      %p228 = scmp.ne.s32.totalorder %s223, %s225
      %p229 = scmp.eq.s32.totalorder %s21, 0
      %p230 = por %p228, %p229
      %p231 = scmp.ne.s32.totalorder %s223, %s225
      %p232 = scmp.eq.s32.totalorder %s26, 1
      %p233 = por %p231, %p232
      %p234 = scmp.ne.s32.totalorder %s225, %s226
      %p235 = scmp.eq.s32.totalorder %s26, 0
      %p236 = por %p234, %p235
      %p237 = scmp.ne.s32.totalorder %s225, %s226
      %p238 = scmp.eq.s32.totalorder %s27, 1
      %p239 = por %p237, %p238
      %p241 = scmp.ne.s32.totalorder %s226, %s240
      %p242 = scmp.eq.s32.totalorder %s27, 0
      %p243 = por %p241, %p242
      %s245 = sadd.s32 %s244, 1
      %p248 = scmp.eq.s32.totalorder %s21, 1
      %p249 = scmp.ne.s32.totalorder %s244, %s246
      %p250 = scmp.eq.s32.totalorder %s21, 0
      %p251 = por %p249, %p250
      %p252 = scmp.ne.s32.totalorder %s244, %s246
      %p253 = scmp.eq.s32.totalorder %s26, 1
      %p254 = por %p252, %p253
      %p255 = scmp.ne.s32.totalorder %s246, %s247
      %p256 = scmp.eq.s32.totalorder %s26, 0
      %p257 = por %p255, %p256
      %p258 = scmp.ne.s32.totalorder %s246, %s247
      %p259 = scmp.eq.s32.totalorder %s27, 1
      %p260 = por %p258, %p259
      %p262 = scmp.ne.s32.totalorder %s247, %s261
      %p263 = scmp.eq.s32.totalorder %s27, 0
      %p264 = por %p262, %p263
      %s266 = sadd.s32 %s265, 1
      %p269 = scmp.eq.s32.totalorder %s21, 1
      %p270 = scmp.ne.s32.totalorder %s265, %s267
      %p271 = scmp.eq.s32.totalorder %s21, 0
      %p272 = por %p270, %p271
      %p273 = scmp.ne.s32.totalorder %s265, %s267
      %p274 = scmp.eq.s32.totalorder %s26, 1
      %p275 = por %p273, %p274
      %p276 = scmp.ne.s32.totalorder %s267, %s268
      %p277 = scmp.eq.s32.totalorder %s26, 0
      %p278 = por %p276, %p277
      %p279 = scmp.ne.s32.totalorder %s267, %s268
      %p280 = scmp.eq.s32.totalorder %s27, 1
      %p281 = por %p279, %p280
      %p283 = scmp.ne.s32.totalorder %s268, %s282
      %p284 = scmp.eq.s32.totalorder %s27, 0
      %p285 = por %p283, %p284
      %s286 = ssub.s32 %s21, %s28
      %p287 = scmp.eq.s32.totalorder %s286, 0
      %s289 = sadd.s32 %s288, 1
      %s290 = scalar_select %p287, %s288, %s289
      %p293 = pneg %p287
      %p294 = scmp.eq.s32.totalorder %s21, 1
      %p295 = por %p293, %p294
      %p296 = scmp.ne.s32.totalorder %s288, %s291
      %p297 = scmp.eq.s32.totalorder %s21, 0
      %p298 = por %p296, %p297
      %p299 = scmp.ne.s32.totalorder %s288, %s291
      %p300 = scmp.eq.s32.totalorder %s26, 1
      %p301 = por %p299, %p300
      %p302 = scmp.ne.s32.totalorder %s291, %s292
      %p303 = scmp.eq.s32.totalorder %s26, 0
      %p304 = por %p302, %p303
      %p305 = scmp.ne.s32.totalorder %s291, %s292
      %p306 = scmp.eq.s32.totalorder %s27, 1
      %p307 = por %p305, %p306
      %p309 = scmp.ne.s32.totalorder %s292, %s308
      %p310 = scmp.eq.s32.totalorder %s27, 0
      %p311 = por %p309, %p310
      %p312 = scmp.le.s32.totalorder 1, %s21
      %p313 = scmp.lt.s32.totalorder %s21, 3
      %p314 = pnand %p312, %p313
      %p315 = pneg %p314
      // Predicated region
      $region9: #{tpu_custom_call.1} parent=5 // pred_check
        _
      $region10: #{tpu_custom_call.1} parent=5 // pred_check_branch
        %317 = sbr.rel (%p314) target = $region12
      $region11: #{tpu_custom_call.1} parent=5 // pred_region
        %s318 = ssub.s32 %s21, 1
        // Predicated region
        $region13: #{tpu_custom_call.1} parent=11 // pred_check
          %p319 = pneg %p68
        $region14: #{tpu_custom_call.1} parent=11 // pred_check_branch
          %321 = sbr.rel (%p319) target = $region16
        $region15: #{tpu_custom_call.1} parent=11 // pred_region
          _
        $region16: #{tpu_custom_call.1} parent=11 // pred_fallthru
          _
        // Predicated region
        $region17: #{tpu_custom_call.1} parent=11 // pred_check
          %p322 = pneg %p89
        $region18: #{tpu_custom_call.1} parent=11 // pred_check_branch
          %324 = sbr.rel (%p322) target = $region20
        $region19: #{tpu_custom_call.1} parent=11 // pred_region
          _
        $region20: #{tpu_custom_call.1} parent=11 // pred_fallthru
          _
        // Predicated region
        $region21: #{tpu_custom_call.1} parent=11 // pred_check
          %p325 = pneg %p110
        $region22: #{tpu_custom_call.1} parent=11 // pred_check_branch
          %327 = sbr.rel (%p325) target = $region24
        $region23: #{tpu_custom_call.1} parent=11 // pred_region
          _
        $region24: #{tpu_custom_call.1} parent=11 // pred_fallthru
          _
        // Predicated region
        $region25: #{tpu_custom_call.1} parent=11 // pred_check
          %p328 = pneg %p131
        $region26: #{tpu_custom_call.1} parent=11 // pred_check_branch
          %330 = sbr.rel (%p328) target = $region28
        $region27: #{tpu_custom_call.1} parent=11 // pred_region
          _
        $region28: #{tpu_custom_call.1} parent=11 // pred_fallthru
          _
        // Predicated region
        $region29: #{tpu_custom_call.1} parent=11 // pred_check
          %p331 = pneg %p152
        $region30: #{tpu_custom_call.1} parent=11 // pred_check_branch
          %333 = sbr.rel (%p331) target = $region32
        $region31: #{tpu_custom_call.1} parent=11 // pred_region
          _
        $region32: #{tpu_custom_call.1} parent=11 // pred_fallthru
          _
        // Predicated region
        $region33: #{tpu_custom_call.1} parent=11 // pred_check
          %p334 = pneg %p173
        $region34: #{tpu_custom_call.1} parent=11 // pred_check_branch
          %336 = sbr.rel (%p334) target = $region36
        $region35: #{tpu_custom_call.1} parent=11 // pred_region
          _
        $region36: #{tpu_custom_call.1} parent=11 // pred_fallthru
          _
        // Predicated region
        $region37: #{tpu_custom_call.1} parent=11 // pred_check
          %p337 = pneg %p194
        $region38: #{tpu_custom_call.1} parent=11 // pred_check_branch
          %339 = sbr.rel (%p337) target = $region40
        $region39: #{tpu_custom_call.1} parent=11 // pred_region
          _
        $region40: #{tpu_custom_call.1} parent=11 // pred_fallthru
          _
        // Predicated region
        $region41: #{tpu_custom_call.1} parent=11 // pred_check
          %p340 = pneg %p215
        $region42: #{tpu_custom_call.1} parent=11 // pred_check_branch
          %342 = sbr.rel (%p340) target = $region44
        $region43: #{tpu_custom_call.1} parent=11 // pred_region
          _
        $region44: #{tpu_custom_call.1} parent=11 // pred_fallthru
          _
        // Predicated region
        $region45: #{tpu_custom_call.1} parent=11 // pred_check
          %p343 = pneg %p236
        $region46: #{tpu_custom_call.1} parent=11 // pred_check_branch
          %345 = sbr.rel (%p343) target = $region48
        $region47: #{tpu_custom_call.1} parent=11 // pred_region
          _
        $region48: #{tpu_custom_call.1} parent=11 // pred_fallthru
          _
        // Predicated region
        $region49: #{tpu_custom_call.1} parent=11 // pred_check
          %p346 = pneg %p257
        $region50: #{tpu_custom_call.1} parent=11 // pred_check_branch
          %348 = sbr.rel (%p346) target = $region52
        $region51: #{tpu_custom_call.1} parent=11 // pred_region
          _
        $region52: #{tpu_custom_call.1} parent=11 // pred_fallthru
          _
        // Predicated region
        $region53: #{tpu_custom_call.1} parent=11 // pred_check
          %p349 = pneg %p278
        $region54: #{tpu_custom_call.1} parent=11 // pred_check_branch
          %351 = sbr.rel (%p349) target = $region56
        $region55: #{tpu_custom_call.1} parent=11 // pred_region
          _
        $region56: #{tpu_custom_call.1} parent=11 // pred_fallthru
          _
      $region12: #{tpu_custom_call.1} parent=5 // pred_fallthru
        _
      %p352 = scmp.lt.s32.totalorder %s21, 2
      // Predicated region
      $region57: #{tpu_custom_call.1} parent=5 // pred_check
        %p353 = pneg %p352
      $region58: #{tpu_custom_call.1} parent=5 // pred_check_branch
        %355 = sbr.rel (%p353) target = $region60
      $region59: #{tpu_custom_call.1} parent=5 // pred_region
        // Predicated region
        $region61: #{tpu_custom_call.1} parent=59 // pred_check
          %p356 = pneg %p41
        $region62: #{tpu_custom_call.1} parent=59 // pred_check_branch
          %358 = sbr.rel (%p356) target = $region64
        $region63: #{tpu_custom_call.1} parent=59 // pred_region
          %p359 = scmp.lt.s32.totalorder %s21, 1
          %s360 = scalar_select %p359, %s21, 1
          %s361 = smul.addr %s360, 8
          %s362 = scalar_lea.vmem %s0, %s361
        $region64: #{tpu_custom_call.1} parent=59 // pred_fallthru
          _
      $region60: #{tpu_custom_call.1} parent=5 // pred_fallthru
        _
      %p363 = scmp.le.s32.totalorder 1, %s21
      %p364 = scmp.lt.s32.totalorder %s21, 3
      %p365 = pnand %p363, %p364
      %p366 = pneg %p365
      // Predicated region
      $region65: #{tpu_custom_call.1} parent=5 // pred_check
        _
      $region66: #{tpu_custom_call.1} parent=5 // pred_check_branch
        %368 = sbr.rel (%p365) target = $region68
      $region67: #{tpu_custom_call.1} parent=5 // pred_region
        %s369 = ssub.s32 %s21, 1
        %p370 = scmp.lt.s32.totalorder %s26, 1
        %s371 = scalar_select %p370, %s26, 1
        %s372 = smul.addr %s371, 8
        %s373 = scalar_lea.vmem %s0, %s372
        %p374 = pneg %p47
        %p375 = pneg %p44
        %p376 = pneg %p68
        %p377 = pneg %p65
        %p378 = pneg %p89
        %p379 = pneg %p86
        %p380 = pneg %p110
        %p381 = pneg %p107
        %p382 = pneg %p131
        %p383 = pneg %p128
        %p384 = pneg %p152
        %p385 = pneg %p149
        %p386 = pneg %p173
        %p387 = pneg %p170
        %p388 = pneg %p194
        %p389 = pneg %p191
        %p390 = pneg %p215
        %p391 = pneg %p212
        %p392 = pneg %p236
        %p393 = pneg %p233
        %p394 = pneg %p257
        %p395 = pneg %p254
        %p396 = pneg %p278
        %p397 = pneg %p275
        %p398 = pneg %p304
        %p399 = pneg %p301
        %s400 = sand.u32 %s291, 1
        %s401 = scalar_lea.sflag [#allocation3], %s400
        %s402 = sand.u32 %s291, 1
        %s403 = smul.addr %s402, 8
        %s404 = scalar_lea.vmem [#allocation2], %s403
        %p405 = scmp.lt.s32.totalorder %s26, 1
        %s406 = scalar_select %p405, %s26, 1
        %s407 = smul.addr %s406, 8
        %s408 = scalar_lea.vmem %s0, %s407
        %v409 = vld [vmem:[%s408] sm:$0xff]
        %v410 = vld [vmem:[%s1] sm:$0xff]
        %v411 = vld [vmem:[%s2] sm:$0x1]
        %v412 = vld [vmem:[%s3] sm:$0x1]
        %vm413 = vcmask 261120
        %v414 = vsel %vm413, %v409, 0.0
        %415 = vadd.xlane.f32.xlu0 %v414
        %v416 = vpop.xlane.xlu0 %415
        %v417 = vrcp.pop 32.0
        %v418 = vmul.f32 %v416, %v417
        %v419 = vsub.f32 %v409, %v418
        %v420 = vmul.f32 %v419, %v419
        %v421 = vsel %vm413, %v420, 0.0
        %422 = vadd.xlane.f32.xlu0 %v421
        %v423 = vpop.xlane.xlu0 %422
        %v424 = vmul.f32 %v423, %v417
        %v425 = vadd.f32 %v424, 1e-05
        %v426 = vrsqrt.pop %v425
        %v427 = vmul.f32 %v419, %v426
        %v429 = vlaneseq
        %v430 = vshrl.u32 %v429, 7
        %v431 = vsub.s32 0, %v430
        %v432 = vrot.slane %v411, %v431
        %v434 = vmul.f32 %v427, %v432
        %v436 = vlaneseq
        %v437 = vshrl.u32 %v436, 7
        %v438 = vsub.s32 0, %v437
        %v439 = vrot.slane %v412, %v438
        %v441 = vadd.f32 %v434, %v439
        %v442 = vld [vmem:[%s6] sm:$0xff]
        %v443 = vld [vmem:[%s6 + $0x8] sm:$0xff]
        %v444 = vld [vmem:[%s6 + $0x10] sm:$0xff]
        %v445 = vld [vmem:[%s6 + $0x18] sm:$0xff]
        %v447 = vsel %vm413, %v441, 0
        %449 = vmatprep.subr.mxu0 0.0
        %450 = vmatpush1.msra.mxu0 %v442
        %451 = vmatprep.subr.mxu0 0.0
        %452 = vmatpush1.msra.mxu0 %v443
        %453 = vmatprep.subr.mxu0 0.0
        %454 = vmatpush1.msra.mxu0 %v444
        %455 = vmatprep.subr.mxu0 0.0
        %456 = vmatpush1.msra.mxu0 %v445
        %457 = vmatprep.subr.mxu0 0.0
        %458 = vmatpush1.msra.mxu0 0.0
        %459 = vmatprep.subr.mxu0 0.0
        %460 = vmatpush1.msra.mxu0 0.0
        %461 = vmatprep.subr.mxu0 0.0
        %462 = vmatpush1.msra.mxu0 0.0
        %463 = vmatprep.subr.mxu0 0.0
        %464 = vmatpush1.msra.mxu0 0.0
        %465 = vmatprep.subr.mxu0 0.0
        %466 = vmatpush1.msra.mxu0 0.0
        %467 = vmatprep.subr.mxu0 0.0
        %468 = vmatpush1.msra.mxu0 0.0
        %469 = vmatprep.subr.mxu0 0.0
        %470 = vmatpush1.msra.mxu0 0.0
        %471 = vmatprep.subr.mxu0 0.0
        %472 = vmatpush1.msra.mxu0 0.0
        %473 = vmatprep.subr.mxu0 0.0
        %474 = vmatpush1.msra.mxu0 0.0
        %475 = vmatprep.subr.mxu0 0.0
        %476 = vmatpush1.msra.mxu0 0.0
        %477 = vmatprep.subr.mxu0 0.0
        %478 = vmatpush1.msra.mxu0 0.0
        %479 = vmatprep.subr.mxu0 0.0
        %480 = vmatpush1.msra.mxu0 0.0
        %481 = vmatprep.subr.mxu0 0.0
        %482 = vmatpush1.msra.mxu0 0.0
        %483 = vmatprep.subr.mxu0 0.0
        %484 = vmatpush1.msra.mxu0 0.0
        %485 = vmatprep.subr.mxu0 0.0
        %486 = vmatpush1.msra.mxu0 0.0
        %487 = vmatprep.subr.mxu0 0.0
        %488 = vmatpush1.msra.mxu0 0.0
        %489 = vmatprep.subr.mxu0 0.0
        %490 = vmatpush1.msra.mxu0 0.0
        %491 = vmatprep.subr.mxu0 0.0
        %492 = vmatpush1.msra.mxu0 0.0
        %493 = vmatprep.subr.mxu0 0.0
        %494 = vmatpush1.msra.mxu0 0.0
        %495 = vmatprep.subr.mxu0 0.0
        %496 = vmatpush1.msra.mxu0 0.0
        %497 = vmatprep.subr.mxu0 0.0
        %498 = vmatpush1.msra.mxu0 0.0
        %499 = vmatprep.subr.mxu0 0.0
        %500 = vmatpush1.msra.mxu0 0.0
        %501 = vmatprep.subr.mxu0 0.0
        %502 = vmatpush1.msra.mxu0 0.0
        %503 = vmatprep.subr.mxu0 0.0
        %504 = vmatpush1.msra.mxu0 0.0
        %505 = vmatprep.subr.mxu0 0.0
        %506 = vmatpush1.msra.mxu0 0.0
        %507 = vmatprep.subr.mxu0 0.0
        %508 = vmatpush1.msra.mxu0 0.0
        %509 = vmatprep.subr.mxu0 0.0
        %510 = vmatpush1.msra.mxu0 0.0
        %511 = vmatprep.subr.mxu0 0.0
        %512 = vmatpush1.msra.mxu0 0.0
        %513 = vmatprep.mubr.f32.mxu0 0.0
        %514 = vmatmul.mubr.f32.gmra.mrb[0].mxu0 %v447
        %v515 = vpop.f32.mrb[0].mxu0
        %v516 = vadd.f32 0.0, %v515
        %v517 = vpop.f32.mrb[0].mxu0
        %518 = vdwg.mxu0
        %520 = vrot.lane.b32.xlu0 %v516, 120
        %v521 = vpop.permute.xlu0 %520
        %522 = vrot.lane.b32.xlu0 %v516, 112
        %v523 = vpop.permute.xlu0 %522
        %524 = vrot.lane.b32.xlu0 %v516, 104
        %v525 = vpop.permute.xlu0 %524
        %526 = vrot.lane.b32.xlu0 %v516, 96
        %v527 = vpop.permute.xlu0 %526
        %vm528 = vcmask 64512
        %v529 = vsel %vm528, %v516, 0
        %v531 = vsel %vm528, %v527, 0
        %533 = vmatprep.subr.mxu0 0.0
        %534 = vmatpush1.xpose.msra.mxu0 %v531
        %535 = vmatprep.subr.mxu0 0.0
        %536 = vmatpush1.xpose.msra.mxu0 0.0
        %537 = vmatprep.subr.mxu0 0.0
        %538 = vmatpush1.xpose.msra.mxu0 0.0
        %539 = vmatprep.subr.mxu0 0.0
        %540 = vmatpush1.xpose.msra.mxu0 0.0
        %541 = vmatprep.subr.mxu0 0.0
        %542 = vmatpush1.xpose.msra.mxu0 0.0
        %543 = vmatprep.subr.mxu0 0.0
        %544 = vmatpush1.xpose.msra.mxu0 0.0
        %545 = vmatprep.subr.mxu0 0.0
        %546 = vmatpush1.xpose.msra.mxu0 0.0
        %547 = vmatprep.subr.mxu0 0.0
        %548 = vmatpush1.xpose.msra.mxu0 0.0
        %549 = vmatprep.subr.mxu0 0.0
        %550 = vmatpush1.xpose.msra.mxu0 0.0
        %551 = vmatprep.subr.mxu0 0.0
        %552 = vmatpush1.xpose.msra.mxu0 0.0
        %553 = vmatprep.subr.mxu0 0.0
        %554 = vmatpush1.xpose.msra.mxu0 0.0
        %555 = vmatprep.subr.mxu0 0.0
        %556 = vmatpush1.xpose.msra.mxu0 0.0
        %557 = vmatprep.subr.mxu0 0.0
        %558 = vmatpush1.xpose.msra.mxu0 0.0
        %559 = vmatprep.subr.mxu0 0.0
        %560 = vmatpush1.xpose.msra.mxu0 0.0
        %561 = vmatprep.subr.mxu0 0.0
        %562 = vmatpush1.xpose.msra.mxu0 0.0
        %563 = vmatprep.subr.mxu0 0.0
        %564 = vmatpush1.xpose.msra.mxu0 0.0
        %565 = vmatprep.subr.mxu0 0.0
        %566 = vmatpush1.xpose.msra.mxu0 0.0
        %567 = vmatprep.subr.mxu0 0.0
        %568 = vmatpush1.xpose.msra.mxu0 0.0
        %569 = vmatprep.subr.mxu0 0.0
        %570 = vmatpush1.xpose.msra.mxu0 0.0
        %571 = vmatprep.subr.mxu0 0.0
        %572 = vmatpush1.xpose.msra.mxu0 0.0
        %573 = vmatprep.subr.mxu0 0.0
        %574 = vmatpush1.xpose.msra.mxu0 0.0
        %575 = vmatprep.subr.mxu0 0.0
        %576 = vmatpush1.xpose.msra.mxu0 0.0
        %577 = vmatprep.subr.mxu0 0.0
        %578 = vmatpush1.xpose.msra.mxu0 0.0
        %579 = vmatprep.subr.mxu0 0.0
        %580 = vmatpush1.xpose.msra.mxu0 0.0
        %581 = vmatprep.subr.mxu0 0.0
        %582 = vmatpush1.xpose.msra.mxu0 0.0
        %583 = vmatprep.subr.mxu0 0.0
        %584 = vmatpush1.xpose.msra.mxu0 0.0
        %585 = vmatprep.subr.mxu0 0.0
        %586 = vmatpush1.xpose.msra.mxu0 0.0
        %587 = vmatprep.subr.mxu0 0.0
        %588 = vmatpush1.xpose.msra.mxu0 0.0
        %589 = vmatprep.subr.mxu0 0.0
        %590 = vmatpush1.xpose.msra.mxu0 0.0
        %591 = vmatprep.subr.mxu0 0.0
        %592 = vmatpush1.xpose.msra.mxu0 0.0
        %593 = vmatprep.subr.mxu0 0.0
        %594 = vmatpush1.xpose.msra.mxu0 0.0
        %595 = vmatprep.subr.mxu0 0.0
        %596 = vmatpush1.xpose.msra.mxu0 0.0
        %597 = vmatprep.mubr.f32.mxu0 0.0
        %598 = vmatmul.mubr.f32.gmra.mrb[0].mxu0 %v529
        %v599 = vpop.f32.mrb[0].mxu0
        %v600 = vadd.f32 %v410, %v599
        %v601 = vpop.f32.mrb[0].mxu0
        %602 = vdwg.mxu0
        %603 = vrot.lane.b32.xlu0 %v521, 96
        %v604 = vpop.permute.xlu0 %603
        %v605 = vsel %vm528, %v521, 0
        %v607 = vsel %vm528, %v604, 0
        %609 = vmatprep.subr.mxu0 0.0
        %610 = vmatpush1.xpose.msra.mxu0 %v607
        %611 = vmatprep.subr.mxu0 0.0
        %612 = vmatpush1.xpose.msra.mxu0 0.0
        %613 = vmatprep.subr.mxu0 0.0
        %614 = vmatpush1.xpose.msra.mxu0 0.0
        %615 = vmatprep.subr.mxu0 0.0
        %616 = vmatpush1.xpose.msra.mxu0 0.0
        %617 = vmatprep.subr.mxu0 0.0
        %618 = vmatpush1.xpose.msra.mxu0 0.0
        %619 = vmatprep.subr.mxu0 0.0
        %620 = vmatpush1.xpose.msra.mxu0 0.0
        %621 = vmatprep.subr.mxu0 0.0
        %622 = vmatpush1.xpose.msra.mxu0 0.0
        %623 = vmatprep.subr.mxu0 0.0
        %624 = vmatpush1.xpose.msra.mxu0 0.0
        %625 = vmatprep.subr.mxu0 0.0
        %626 = vmatpush1.xpose.msra.mxu0 0.0
        %627 = vmatprep.subr.mxu0 0.0
        %628 = vmatpush1.xpose.msra.mxu0 0.0
        %629 = vmatprep.subr.mxu0 0.0
        %630 = vmatpush1.xpose.msra.mxu0 0.0
        %631 = vmatprep.subr.mxu0 0.0
        %632 = vmatpush1.xpose.msra.mxu0 0.0
        %633 = vmatprep.subr.mxu0 0.0
        %634 = vmatpush1.xpose.msra.mxu0 0.0
        %635 = vmatprep.subr.mxu0 0.0
        %636 = vmatpush1.xpose.msra.mxu0 0.0
        %637 = vmatprep.subr.mxu0 0.0
        %638 = vmatpush1.xpose.msra.mxu0 0.0
        %639 = vmatprep.subr.mxu0 0.0
        %640 = vmatpush1.xpose.msra.mxu0 0.0
        %641 = vmatprep.subr.mxu0 0.0
        %642 = vmatpush1.xpose.msra.mxu0 0.0
        %643 = vmatprep.subr.mxu0 0.0
        %644 = vmatpush1.xpose.msra.mxu0 0.0
        %645 = vmatprep.subr.mxu0 0.0
        %646 = vmatpush1.xpose.msra.mxu0 0.0
        %647 = vmatprep.subr.mxu0 0.0
        %648 = vmatpush1.xpose.msra.mxu0 0.0
        %649 = vmatprep.subr.mxu0 0.0
        %650 = vmatpush1.xpose.msra.mxu0 0.0
        %651 = vmatprep.subr.mxu0 0.0
        %652 = vmatpush1.xpose.msra.mxu0 0.0
        %653 = vmatprep.subr.mxu0 0.0
        %654 = vmatpush1.xpose.msra.mxu0 0.0
        %655 = vmatprep.subr.mxu0 0.0
        %656 = vmatpush1.xpose.msra.mxu0 0.0
        %657 = vmatprep.subr.mxu0 0.0
        %658 = vmatpush1.xpose.msra.mxu0 0.0
        %659 = vmatprep.subr.mxu0 0.0
        %660 = vmatpush1.xpose.msra.mxu0 0.0
        %661 = vmatprep.subr.mxu0 0.0
        %662 = vmatpush1.xpose.msra.mxu0 0.0
        %663 = vmatprep.subr.mxu0 0.0
        %664 = vmatpush1.xpose.msra.mxu0 0.0
        %665 = vmatprep.subr.mxu0 0.0
        %666 = vmatpush1.xpose.msra.mxu0 0.0
        %667 = vmatprep.subr.mxu0 0.0
        %668 = vmatpush1.xpose.msra.mxu0 0.0
        %669 = vmatprep.subr.mxu0 0.0
        %670 = vmatpush1.xpose.msra.mxu0 0.0
        %671 = vmatprep.subr.mxu0 0.0
        %672 = vmatpush1.xpose.msra.mxu0 0.0
        %673 = vmatprep.mubr.f32.mxu0 0.0
        %674 = vmatmul.mubr.f32.gmra.mrb[0].mxu0 %v605
        %v675 = vpop.f32.mrb[0].mxu0
        %v676 = vadd.f32 %v410, %v675
        %v677 = vpop.f32.mrb[0].mxu0
        %678 = vdwg.mxu0
        %679 = vrot.lane.b32.xlu0 %v523, 96
        %v680 = vpop.permute.xlu0 %679
        %v681 = vsel %vm528, %v523, 0
        %v683 = vsel %vm528, %v680, 0
        %685 = vmatprep.subr.mxu0 0.0
        %686 = vmatpush1.xpose.msra.mxu0 %v683
        %687 = vmatprep.subr.mxu0 0.0
        %688 = vmatpush1.xpose.msra.mxu0 0.0
        %689 = vmatprep.subr.mxu0 0.0
        %690 = vmatpush1.xpose.msra.mxu0 0.0
        %691 = vmatprep.subr.mxu0 0.0
        %692 = vmatpush1.xpose.msra.mxu0 0.0
        %693 = vmatprep.subr.mxu0 0.0
        %694 = vmatpush1.xpose.msra.mxu0 0.0
        %695 = vmatprep.subr.mxu0 0.0
        %696 = vmatpush1.xpose.msra.mxu0 0.0
        %697 = vmatprep.subr.mxu0 0.0
        %698 = vmatpush1.xpose.msra.mxu0 0.0
        %699 = vmatprep.subr.mxu0 0.0
        %700 = vmatpush1.xpose.msra.mxu0 0.0
        %701 = vmatprep.subr.mxu0 0.0
        %702 = vmatpush1.xpose.msra.mxu0 0.0
        %703 = vmatprep.subr.mxu0 0.0
        %704 = vmatpush1.xpose.msra.mxu0 0.0
        %705 = vmatprep.subr.mxu0 0.0
        %706 = vmatpush1.xpose.msra.mxu0 0.0
        %707 = vmatprep.subr.mxu0 0.0
        %708 = vmatpush1.xpose.msra.mxu0 0.0
        %709 = vmatprep.subr.mxu0 0.0
        %710 = vmatpush1.xpose.msra.mxu0 0.0
        %711 = vmatprep.subr.mxu0 0.0
        %712 = vmatpush1.xpose.msra.mxu0 0.0
        %713 = vmatprep.subr.mxu0 0.0
        %714 = vmatpush1.xpose.msra.mxu0 0.0
        %715 = vmatprep.subr.mxu0 0.0
        %716 = vmatpush1.xpose.msra.mxu0 0.0
        %717 = vmatprep.subr.mxu0 0.0
        %718 = vmatpush1.xpose.msra.mxu0 0.0
        %719 = vmatprep.subr.mxu0 0.0
        %720 = vmatpush1.xpose.msra.mxu0 0.0
        %721 = vmatprep.subr.mxu0 0.0
        %722 = vmatpush1.xpose.msra.mxu0 0.0
        %723 = vmatprep.subr.mxu0 0.0
        %724 = vmatpush1.xpose.msra.mxu0 0.0
        %725 = vmatprep.subr.mxu0 0.0
        %726 = vmatpush1.xpose.msra.mxu0 0.0
        %727 = vmatprep.subr.mxu0 0.0
        %728 = vmatpush1.xpose.msra.mxu0 0.0
        %729 = vmatprep.subr.mxu0 0.0
        %730 = vmatpush1.xpose.msra.mxu0 0.0
        %731 = vmatprep.subr.mxu0 0.0
        %732 = vmatpush1.xpose.msra.mxu0 0.0
        %733 = vmatprep.subr.mxu0 0.0
        %734 = vmatpush1.xpose.msra.mxu0 0.0
        %735 = vmatprep.subr.mxu0 0.0
        %736 = vmatpush1.xpose.msra.mxu0 0.0
        %737 = vmatprep.subr.mxu0 0.0
        %738 = vmatpush1.xpose.msra.mxu0 0.0
        %739 = vmatprep.subr.mxu0 0.0
        %740 = vmatpush1.xpose.msra.mxu0 0.0
        %741 = vmatprep.subr.mxu0 0.0
        %742 = vmatpush1.xpose.msra.mxu0 0.0
        %743 = vmatprep.subr.mxu0 0.0
        %744 = vmatpush1.xpose.msra.mxu0 0.0
        %745 = vmatprep.subr.mxu0 0.0
        %746 = vmatpush1.xpose.msra.mxu0 0.0
        %747 = vmatprep.subr.mxu0 0.0
        %748 = vmatpush1.xpose.msra.mxu0 0.0
        %749 = vmatprep.mubr.f32.mxu0 0.0
        %750 = vmatmul.mubr.f32.gmra.mrb[0].mxu0 %v681
        %v751 = vpop.f32.mrb[0].mxu0
        %v752 = vadd.f32 %v410, %v751
        %v753 = vpop.f32.mrb[0].mxu0
        %754 = vdwg.mxu0
        %755 = vrot.lane.b32.xlu0 %v525, 96
        %v756 = vpop.permute.xlu0 %755
        %v757 = vsel %vm528, %v525, 0
        %v759 = vsel %vm528, %v756, 0
        %761 = vmatprep.subr.mxu0 0.0
        %762 = vmatpush1.xpose.msra.mxu0 %v759
        %763 = vmatprep.subr.mxu0 0.0
        %764 = vmatpush1.xpose.msra.mxu0 0.0
        %765 = vmatprep.subr.mxu0 0.0
        %766 = vmatpush1.xpose.msra.mxu0 0.0
        %767 = vmatprep.subr.mxu0 0.0
        %768 = vmatpush1.xpose.msra.mxu0 0.0
        %769 = vmatprep.subr.mxu0 0.0
        %770 = vmatpush1.xpose.msra.mxu0 0.0
        %771 = vmatprep.subr.mxu0 0.0
        %772 = vmatpush1.xpose.msra.mxu0 0.0
        %773 = vmatprep.subr.mxu0 0.0
        %774 = vmatpush1.xpose.msra.mxu0 0.0
        %775 = vmatprep.subr.mxu0 0.0
        %776 = vmatpush1.xpose.msra.mxu0 0.0
        %777 = vmatprep.subr.mxu0 0.0
        %778 = vmatpush1.xpose.msra.mxu0 0.0
        %779 = vmatprep.subr.mxu0 0.0
        %780 = vmatpush1.xpose.msra.mxu0 0.0
        %781 = vmatprep.subr.mxu0 0.0
        %782 = vmatpush1.xpose.msra.mxu0 0.0
        %783 = vmatprep.subr.mxu0 0.0
        %784 = vmatpush1.xpose.msra.mxu0 0.0
        %785 = vmatprep.subr.mxu0 0.0
        %786 = vmatpush1.xpose.msra.mxu0 0.0
        %787 = vmatprep.subr.mxu0 0.0
        %788 = vmatpush1.xpose.msra.mxu0 0.0
        %789 = vmatprep.subr.mxu0 0.0
        %790 = vmatpush1.xpose.msra.mxu0 0.0
        %791 = vmatprep.subr.mxu0 0.0
        %792 = vmatpush1.xpose.msra.mxu0 0.0
        %793 = vmatprep.subr.mxu0 0.0
        %794 = vmatpush1.xpose.msra.mxu0 0.0
        %795 = vmatprep.subr.mxu0 0.0
        %796 = vmatpush1.xpose.msra.mxu0 0.0
        %797 = vmatprep.subr.mxu0 0.0
        %798 = vmatpush1.xpose.msra.mxu0 0.0
        %799 = vmatprep.subr.mxu0 0.0
        %800 = vmatpush1.xpose.msra.mxu0 0.0
        %801 = vmatprep.subr.mxu0 0.0
        %802 = vmatpush1.xpose.msra.mxu0 0.0
        %803 = vmatprep.subr.mxu0 0.0
        %804 = vmatpush1.xpose.msra.mxu0 0.0
        %805 = vmatprep.subr.mxu0 0.0
        %806 = vmatpush1.xpose.msra.mxu0 0.0
        %807 = vmatprep.subr.mxu0 0.0
        %808 = vmatpush1.xpose.msra.mxu0 0.0
        %809 = vmatprep.subr.mxu0 0.0
        %810 = vmatpush1.xpose.msra.mxu0 0.0
        %811 = vmatprep.subr.mxu0 0.0
        %812 = vmatpush1.xpose.msra.mxu0 0.0
        %813 = vmatprep.subr.mxu0 0.0
        %814 = vmatpush1.xpose.msra.mxu0 0.0
        %815 = vmatprep.subr.mxu0 0.0
        %816 = vmatpush1.xpose.msra.mxu0 0.0
        %817 = vmatprep.subr.mxu0 0.0
        %818 = vmatpush1.xpose.msra.mxu0 0.0
        %819 = vmatprep.subr.mxu0 0.0
        %820 = vmatpush1.xpose.msra.mxu0 0.0
        %821 = vmatprep.subr.mxu0 0.0
        %822 = vmatpush1.xpose.msra.mxu0 0.0
        %823 = vmatprep.subr.mxu0 0.0
        %824 = vmatpush1.xpose.msra.mxu0 0.0
        %825 = vmatprep.mubr.f32.mxu0 0.0
        %826 = vmatmul.mubr.f32.gmra.mrb[0].mxu0 %v757
        %v827 = vpop.f32.mrb[0].mxu0
        %v828 = vadd.f32 %v410, %v827
        %v829 = vpop.f32.mrb[0].mxu0
        %830 = vdwg.mxu0
        %v831 = vsel %vm528, %v600, -inf
        %832 = vmax.xlane.f32.xlu0 %v831
        %v833 = vpop.xlane.xlu0 %832
        %v834 = vsel %vm528, %v676, -inf
        %835 = vmax.xlane.f32.xlu0 %v834
        %v836 = vpop.xlane.xlu0 %835
        %v837 = vsel %vm528, %v752, -inf
        %838 = vmax.xlane.f32.xlu0 %v837
        %v839 = vpop.xlane.xlu0 %838
        %v840 = vsel %vm528, %v828, -inf
        %841 = vmax.xlane.f32.xlu0 %v840
        %v842 = vpop.xlane.xlu0 %841
        %v843 = vsub.f32 %v600, %v833
        %v844 = vsub.f32 %v676, %v836
        %v845 = vsub.f32 %v752, %v839
        %v846 = vsub.f32 %v828, %v842
        %v847 = vmul.f32 %v843, 1.442695
        %v848 = vpow.pop %v847
        %v849 = vmul.f32 %v844, 1.442695
        %v850 = vpow.pop %v849
        %v851 = vmul.f32 %v845, 1.442695
        %v852 = vpow.pop %v851
        %v853 = vmul.f32 %v846, 1.442695
        %v854 = vpow.pop %v853
        %v855 = vsel %vm528, %v848, 0.0
        %856 = vadd.xlane.f32.xlu0 %v855
        %v857 = vpop.xlane.xlu0 %856
        %v858 = vsel %vm528, %v850, 0.0
        %859 = vadd.xlane.f32.xlu0 %v858
        %v860 = vpop.xlane.xlu0 %859
        %v861 = vsel %vm528, %v852, 0.0
        %862 = vadd.xlane.f32.xlu0 %v861
        %v863 = vpop.xlane.xlu0 %862
        %v864 = vsel %vm528, %v854, 0.0
        %865 = vadd.xlane.f32.xlu0 %v864
        %v866 = vpop.xlane.xlu0 %865
        %v867 = vrcp.pop %v857
        %v868 = vrcp.pop %v860
        %v869 = vrcp.pop %v863
        %v870 = vrcp.pop %v866
        %v871 = vmul.f32 %v848, %v867
        %v872 = vmul.f32 %v850, %v868
        %v873 = vmul.f32 %v852, %v869
        %v874 = vmul.f32 %v854, %v870
        %875 = vrot.lane.b32.xlu0 %v516, 64
        %v876 = vpop.permute.xlu0 %875
        %v879 = vsel %vm528, %v871, 0
        %881 = vmatprep.subr.mxu0 0.0
        %882 = vmatpush1.msra.mxu0 %v876
        %883 = vmatprep.subr.mxu0 0.0
        %884 = vmatpush1.msra.mxu0 0.0
        %885 = vmatprep.subr.mxu0 0.0
        %886 = vmatpush1.msra.mxu0 0.0
        %887 = vmatprep.subr.mxu0 0.0
        %888 = vmatpush1.msra.mxu0 0.0
        %889 = vmatprep.subr.mxu0 0.0
        %890 = vmatpush1.msra.mxu0 0.0
        %891 = vmatprep.subr.mxu0 0.0
        %892 = vmatpush1.msra.mxu0 0.0
        %893 = vmatprep.subr.mxu0 0.0
        %894 = vmatpush1.msra.mxu0 0.0
        %895 = vmatprep.subr.mxu0 0.0
        %896 = vmatpush1.msra.mxu0 0.0
        %897 = vmatprep.subr.mxu0 0.0
        %898 = vmatpush1.msra.mxu0 0.0
        %899 = vmatprep.subr.mxu0 0.0
        %900 = vmatpush1.msra.mxu0 0.0
        %901 = vmatprep.subr.mxu0 0.0
        %902 = vmatpush1.msra.mxu0 0.0
        %903 = vmatprep.subr.mxu0 0.0
        %904 = vmatpush1.msra.mxu0 0.0
        %905 = vmatprep.subr.mxu0 0.0
        %906 = vmatpush1.msra.mxu0 0.0
        %907 = vmatprep.subr.mxu0 0.0
        %908 = vmatpush1.msra.mxu0 0.0
        %909 = vmatprep.subr.mxu0 0.0
        %910 = vmatpush1.msra.mxu0 0.0
        %911 = vmatprep.subr.mxu0 0.0
        %912 = vmatpush1.msra.mxu0 0.0
        %913 = vmatprep.subr.mxu0 0.0
        %914 = vmatpush1.msra.mxu0 0.0
        %915 = vmatprep.subr.mxu0 0.0
        %916 = vmatpush1.msra.mxu0 0.0
        %917 = vmatprep.subr.mxu0 0.0
        %918 = vmatpush1.msra.mxu0 0.0
        %919 = vmatprep.subr.mxu0 0.0
        %920 = vmatpush1.msra.mxu0 0.0
        %921 = vmatprep.subr.mxu0 0.0
        %922 = vmatpush1.msra.mxu0 0.0
        %923 = vmatprep.subr.mxu0 0.0
        %924 = vmatpush1.msra.mxu0 0.0
        %925 = vmatprep.subr.mxu0 0.0
        %926 = vmatpush1.msra.mxu0 0.0
        %927 = vmatprep.subr.mxu0 0.0
        %928 = vmatpush1.msra.mxu0 0.0
        %929 = vmatprep.subr.mxu0 0.0
        %930 = vmatpush1.msra.mxu0 0.0
        %931 = vmatprep.subr.mxu0 0.0
        %932 = vmatpush1.msra.mxu0 0.0
        %933 = vmatprep.subr.mxu0 0.0
        %934 = vmatpush1.msra.mxu0 0.0
        %935 = vmatprep.subr.mxu0 0.0
        %936 = vmatpush1.msra.mxu0 0.0
        %937 = vmatprep.subr.mxu0 0.0
        %938 = vmatpush1.msra.mxu0 0.0
        %939 = vmatprep.subr.mxu0 0.0
        %940 = vmatpush1.msra.mxu0 0.0
        %941 = vmatprep.subr.mxu0 0.0
        %942 = vmatpush1.msra.mxu0 0.0
        %943 = vmatprep.subr.mxu0 0.0
        %944 = vmatpush1.msra.mxu0 0.0
        %945 = vmatprep.mubr.f32.mxu0 0.0
        %946 = vmatmul.mubr.f32.gmra.mrb[0].mxu0 %v879
        %v947 = vpop.f32.mrb[0].mxu0
        %v948 = vadd.f32 0.0, %v947
        %v949 = vpop.f32.mrb[0].mxu0
        %950 = vdwg.mxu0
        %951 = vrot.lane.b32.xlu0 %v521, 64
        %v952 = vpop.permute.xlu0 %951
        %v955 = vsel %vm528, %v872, 0
        %957 = vmatprep.subr.mxu0 0.0
        %958 = vmatpush1.msra.mxu0 %v952
        %959 = vmatprep.subr.mxu0 0.0
        %960 = vmatpush1.msra.mxu0 0.0
        %961 = vmatprep.subr.mxu0 0.0
        %962 = vmatpush1.msra.mxu0 0.0
        %963 = vmatprep.subr.mxu0 0.0
        %964 = vmatpush1.msra.mxu0 0.0
        %965 = vmatprep.subr.mxu0 0.0
        %966 = vmatpush1.msra.mxu0 0.0
        %967 = vmatprep.subr.mxu0 0.0
        %968 = vmatpush1.msra.mxu0 0.0
        %969 = vmatprep.subr.mxu0 0.0
        %970 = vmatpush1.msra.mxu0 0.0
        %971 = vmatprep.subr.mxu0 0.0
        %972 = vmatpush1.msra.mxu0 0.0
        %973 = vmatprep.subr.mxu0 0.0
        %974 = vmatpush1.msra.mxu0 0.0
        %975 = vmatprep.subr.mxu0 0.0
        %976 = vmatpush1.msra.mxu0 0.0
        %977 = vmatprep.subr.mxu0 0.0
        %978 = vmatpush1.msra.mxu0 0.0
        %979 = vmatprep.subr.mxu0 0.0
        %980 = vmatpush1.msra.mxu0 0.0
        %981 = vmatprep.subr.mxu0 0.0
        %982 = vmatpush1.msra.mxu0 0.0
        %983 = vmatprep.subr.mxu0 0.0
        %984 = vmatpush1.msra.mxu0 0.0
        %985 = vmatprep.subr.mxu0 0.0
        %986 = vmatpush1.msra.mxu0 0.0
        %987 = vmatprep.subr.mxu0 0.0
        %988 = vmatpush1.msra.mxu0 0.0
        %989 = vmatprep.subr.mxu0 0.0
        %990 = vmatpush1.msra.mxu0 0.0
        %991 = vmatprep.subr.mxu0 0.0
        %992 = vmatpush1.msra.mxu0 0.0
        %993 = vmatprep.subr.mxu0 0.0
        %994 = vmatpush1.msra.mxu0 0.0
        %995 = vmatprep.subr.mxu0 0.0
        %996 = vmatpush1.msra.mxu0 0.0
        %997 = vmatprep.subr.mxu0 0.0
        %998 = vmatpush1.msra.mxu0 0.0
        %999 = vmatprep.subr.mxu0 0.0
        %1000 = vmatpush1.msra.mxu0 0.0
        %1001 = vmatprep.subr.mxu0 0.0
        %1002 = vmatpush1.msra.mxu0 0.0
        %1003 = vmatprep.subr.mxu0 0.0
        %1004 = vmatpush1.msra.mxu0 0.0
        %1005 = vmatprep.subr.mxu0 0.0
        %1006 = vmatpush1.msra.mxu0 0.0
        %1007 = vmatprep.subr.mxu0 0.0
        %1008 = vmatpush1.msra.mxu0 0.0
        %1009 = vmatprep.subr.mxu0 0.0
        %1010 = vmatpush1.msra.mxu0 0.0
        %1011 = vmatprep.subr.mxu0 0.0
        %1012 = vmatpush1.msra.mxu0 0.0
        %1013 = vmatprep.subr.mxu0 0.0
        %1014 = vmatpush1.msra.mxu0 0.0
        %1015 = vmatprep.subr.mxu0 0.0
        %1016 = vmatpush1.msra.mxu0 0.0
        %1017 = vmatprep.subr.mxu0 0.0
        %1018 = vmatpush1.msra.mxu0 0.0
        %1019 = vmatprep.subr.mxu0 0.0
        %1020 = vmatpush1.msra.mxu0 0.0
        %1021 = vmatprep.mubr.f32.mxu0 0.0
        %1022 = vmatmul.mubr.f32.gmra.mrb[0].mxu0 %v955
        %v1023 = vpop.f32.mrb[0].mxu0
        %v1024 = vadd.f32 0.0, %v1023
        %v1025 = vpop.f32.mrb[0].mxu0
        %1026 = vdwg.mxu0
        %1027 = vrot.lane.b32.xlu0 %v523, 64
        %v1028 = vpop.permute.xlu0 %1027
        %v1031 = vsel %vm528, %v873, 0
        %1033 = vmatprep.subr.mxu0 0.0
        %1034 = vmatpush1.msra.mxu0 %v1028
        %1035 = vmatprep.subr.mxu0 0.0
        %1036 = vmatpush1.msra.mxu0 0.0
        %1037 = vmatprep.subr.mxu0 0.0
        %1038 = vmatpush1.msra.mxu0 0.0
        %1039 = vmatprep.subr.mxu0 0.0
        %1040 = vmatpush1.msra.mxu0 0.0
        %1041 = vmatprep.subr.mxu0 0.0
        %1042 = vmatpush1.msra.mxu0 0.0
        %1043 = vmatprep.subr.mxu0 0.0
        %1044 = vmatpush1.msra.mxu0 0.0
        %1045 = vmatprep.subr.mxu0 0.0
        %1046 = vmatpush1.msra.mxu0 0.0
        %1047 = vmatprep.subr.mxu0 0.0
        %1048 = vmatpush1.msra.mxu0 0.0
        %1049 = vmatprep.subr.mxu0 0.0
        %1050 = vmatpush1.msra.mxu0 0.0
        %1051 = vmatprep.subr.mxu0 0.0
        %1052 = vmatpush1.msra.mxu0 0.0
        %1053 = vmatprep.subr.mxu0 0.0
        %1054 = vmatpush1.msra.mxu0 0.0
        %1055 = vmatprep.subr.mxu0 0.0
        %1056 = vmatpush1.msra.mxu0 0.0
        %1057 = vmatprep.subr.mxu0 0.0
        %1058 = vmatpush1.msra.mxu0 0.0
        %1059 = vmatprep.subr.mxu0 0.0
        %1060 = vmatpush1.msra.mxu0 0.0
        %1061 = vmatprep.subr.mxu0 0.0
        %1062 = vmatpush1.msra.mxu0 0.0
        %1063 = vmatprep.subr.mxu0 0.0
        %1064 = vmatpush1.msra.mxu0 0.0
        %1065 = vmatprep.subr.mxu0 0.0
        %1066 = vmatpush1.msra.mxu0 0.0
        %1067 = vmatprep.subr.mxu0 0.0
        %1068 = vmatpush1.msra.mxu0 0.0
        %1069 = vmatprep.subr.mxu0 0.0
        %1070 = vmatpush1.msra.mxu0 0.0
        %1071 = vmatprep.subr.mxu0 0.0
        %1072 = vmatpush1.msra.mxu0 0.0
        %1073 = vmatprep.subr.mxu0 0.0
        %1074 = vmatpush1.msra.mxu0 0.0
        %1075 = vmatprep.subr.mxu0 0.0
        %1076 = vmatpush1.msra.mxu0 0.0
        %1077 = vmatprep.subr.mxu0 0.0
        %1078 = vmatpush1.msra.mxu0 0.0
        %1079 = vmatprep.subr.mxu0 0.0
        %1080 = vmatpush1.msra.mxu0 0.0
        %1081 = vmatprep.subr.mxu0 0.0
        %1082 = vmatpush1.msra.mxu0 0.0
        %1083 = vmatprep.subr.mxu0 0.0
        %1084 = vmatpush1.msra.mxu0 0.0
        %1085 = vmatprep.subr.mxu0 0.0
        %1086 = vmatpush1.msra.mxu0 0.0
        %1087 = vmatprep.subr.mxu0 0.0
        %1088 = vmatpush1.msra.mxu0 0.0
        %1089 = vmatprep.subr.mxu0 0.0
        %1090 = vmatpush1.msra.mxu0 0.0
        %1091 = vmatprep.subr.mxu0 0.0
        %1092 = vmatpush1.msra.mxu0 0.0
        %1093 = vmatprep.subr.mxu0 0.0
        %1094 = vmatpush1.msra.mxu0 0.0
        %1095 = vmatprep.subr.mxu0 0.0
        %1096 = vmatpush1.msra.mxu0 0.0
        %1097 = vmatprep.mubr.f32.mxu0 0.0
        %1098 = vmatmul.mubr.f32.gmra.mrb[0].mxu0 %v1031
        %v1099 = vpop.f32.mrb[0].mxu0
        %v1100 = vadd.f32 0.0, %v1099
        %v1101 = vpop.f32.mrb[0].mxu0
        %1102 = vdwg.mxu0
        %1103 = vrot.lane.b32.xlu0 %v525, 64
        %v1104 = vpop.permute.xlu0 %1103
        %v1107 = vsel %vm528, %v874, 0
        %1109 = vmatprep.subr.mxu0 0.0
        %1110 = vmatpush1.msra.mxu0 %v1104
        %1111 = vmatprep.subr.mxu0 0.0
        %1112 = vmatpush1.msra.mxu0 0.0
        %1113 = vmatprep.subr.mxu0 0.0
        %1114 = vmatpush1.msra.mxu0 0.0
        %1115 = vmatprep.subr.mxu0 0.0
        %1116 = vmatpush1.msra.mxu0 0.0
        %1117 = vmatprep.subr.mxu0 0.0
        %1118 = vmatpush1.msra.mxu0 0.0
        %1119 = vmatprep.subr.mxu0 0.0
        %1120 = vmatpush1.msra.mxu0 0.0
        %1121 = vmatprep.subr.mxu0 0.0
        %1122 = vmatpush1.msra.mxu0 0.0
        %1123 = vmatprep.subr.mxu0 0.0
        %1124 = vmatpush1.msra.mxu0 0.0
        %1125 = vmatprep.subr.mxu0 0.0
        %1126 = vmatpush1.msra.mxu0 0.0
        %1127 = vmatprep.subr.mxu0 0.0
        %1128 = vmatpush1.msra.mxu0 0.0
        %1129 = vmatprep.subr.mxu0 0.0
        %1130 = vmatpush1.msra.mxu0 0.0
        %1131 = vmatprep.subr.mxu0 0.0
        %1132 = vmatpush1.msra.mxu0 0.0
        %1133 = vmatprep.subr.mxu0 0.0
        %1134 = vmatpush1.msra.mxu0 0.0
        %1135 = vmatprep.subr.mxu0 0.0
        %1136 = vmatpush1.msra.mxu0 0.0
        %1137 = vmatprep.subr.mxu0 0.0
        %1138 = vmatpush1.msra.mxu0 0.0
        %1139 = vmatprep.subr.mxu0 0.0
        %1140 = vmatpush1.msra.mxu0 0.0
        %1141 = vmatprep.subr.mxu0 0.0
        %1142 = vmatpush1.msra.mxu0 0.0
        %1143 = vmatprep.subr.mxu0 0.0
        %1144 = vmatpush1.msra.mxu0 0.0
        %1145 = vmatprep.subr.mxu0 0.0
        %1146 = vmatpush1.msra.mxu0 0.0
        %1147 = vmatprep.subr.mxu0 0.0
        %1148 = vmatpush1.msra.mxu0 0.0
        %1149 = vmatprep.subr.mxu0 0.0
        %1150 = vmatpush1.msra.mxu0 0.0
        %1151 = vmatprep.subr.mxu0 0.0
        %1152 = vmatpush1.msra.mxu0 0.0
        %1153 = vmatprep.subr.mxu0 0.0
        %1154 = vmatpush1.msra.mxu0 0.0
        %1155 = vmatprep.subr.mxu0 0.0
        %1156 = vmatpush1.msra.mxu0 0.0
        %1157 = vmatprep.subr.mxu0 0.0
        %1158 = vmatpush1.msra.mxu0 0.0
        %1159 = vmatprep.subr.mxu0 0.0
        %1160 = vmatpush1.msra.mxu0 0.0
        %1161 = vmatprep.subr.mxu0 0.0
        %1162 = vmatpush1.msra.mxu0 0.0
        %1163 = vmatprep.subr.mxu0 0.0
        %1164 = vmatpush1.msra.mxu0 0.0
        %1165 = vmatprep.subr.mxu0 0.0
        %1166 = vmatpush1.msra.mxu0 0.0
        %1167 = vmatprep.subr.mxu0 0.0
        %1168 = vmatpush1.msra.mxu0 0.0
        %1169 = vmatprep.subr.mxu0 0.0
        %1170 = vmatpush1.msra.mxu0 0.0
        %1171 = vmatprep.subr.mxu0 0.0
        %1172 = vmatpush1.msra.mxu0 0.0
        %1173 = vmatprep.mubr.f32.mxu0 0.0
        %1174 = vmatmul.mubr.f32.gmra.mrb[0].mxu0 %v1107
        %v1175 = vpop.f32.mrb[0].mxu0
        %v1176 = vadd.f32 0.0, %v1175
        %v1177 = vpop.f32.mrb[0].mxu0
        %1178 = vdwg.mxu0
        %1180 = vrot.lane.b32.xlu0 %v1024, 8
        %v1181 = vpop.permute.xlu0 %1180
        %1184 = vrot.lane.b32.xlu0 %v1100, 16
        %v1185 = vpop.permute.xlu0 %1184
        %1188 = vrot.lane.b32.xlu0 %v1176, 24
        %v1189 = vpop.permute.xlu0 %1188
        %v1191 = vsel %vm528, %v948, %v1181
        %vm1192 = vcmask 130048
        %v1193 = vsel %vm1192, %v1191, %v1185
        %vm1194 = vcmask 195584
        %v1195 = vsel %vm1194, %v1193, %v1189
        %v1196 = vld [vmem:[%s7] sm:$0xff]
        %v1197 = vld [vmem:[%s7 + $0x8] sm:$0xff]
        %v1198 = vld [vmem:[%s7 + $0x10] sm:$0xff]
        %v1199 = vld [vmem:[%s7 + $0x18] sm:$0xff]
        %v1201 = vsel %vm413, %v1195, 0
        %1203 = vmatprep.subr.mxu0 0.0
        %1204 = vmatpush1.msra.mxu0 %v1196
        %1205 = vmatprep.subr.mxu0 0.0
        %1206 = vmatpush1.msra.mxu0 %v1197
        %1207 = vmatprep.subr.mxu0 0.0
        %1208 = vmatpush1.msra.mxu0 %v1198
        %1209 = vmatprep.subr.mxu0 0.0
        %1210 = vmatpush1.msra.mxu0 %v1199
        %1211 = vmatprep.subr.mxu0 0.0
        %1212 = vmatpush1.msra.mxu0 0.0
        %1213 = vmatprep.subr.mxu0 0.0
        %1214 = vmatpush1.msra.mxu0 0.0
        %1215 = vmatprep.subr.mxu0 0.0
        %1216 = vmatpush1.msra.mxu0 0.0
        %1217 = vmatprep.subr.mxu0 0.0
        %1218 = vmatpush1.msra.mxu0 0.0
        %1219 = vmatprep.subr.mxu0 0.0
        %1220 = vmatpush1.msra.mxu0 0.0
        %1221 = vmatprep.subr.mxu0 0.0
        %1222 = vmatpush1.msra.mxu0 0.0
        %1223 = vmatprep.subr.mxu0 0.0
        %1224 = vmatpush1.msra.mxu0 0.0
        %1225 = vmatprep.subr.mxu0 0.0
        %1226 = vmatpush1.msra.mxu0 0.0
        %1227 = vmatprep.subr.mxu0 0.0
        %1228 = vmatpush1.msra.mxu0 0.0
        %1229 = vmatprep.subr.mxu0 0.0
        %1230 = vmatpush1.msra.mxu0 0.0
        %1231 = vmatprep.subr.mxu0 0.0
        %1232 = vmatpush1.msra.mxu0 0.0
        %1233 = vmatprep.subr.mxu0 0.0
        %1234 = vmatpush1.msra.mxu0 0.0
        %1235 = vmatprep.subr.mxu0 0.0
        %1236 = vmatpush1.msra.mxu0 0.0
        %1237 = vmatprep.subr.mxu0 0.0
        %1238 = vmatpush1.msra.mxu0 0.0
        %1239 = vmatprep.subr.mxu0 0.0
        %1240 = vmatpush1.msra.mxu0 0.0
        %1241 = vmatprep.subr.mxu0 0.0
        %1242 = vmatpush1.msra.mxu0 0.0
        %1243 = vmatprep.subr.mxu0 0.0
        %1244 = vmatpush1.msra.mxu0 0.0
        %1245 = vmatprep.subr.mxu0 0.0
        %1246 = vmatpush1.msra.mxu0 0.0
        %1247 = vmatprep.subr.mxu0 0.0
        %1248 = vmatpush1.msra.mxu0 0.0
        %1249 = vmatprep.subr.mxu0 0.0
        %1250 = vmatpush1.msra.mxu0 0.0
        %1251 = vmatprep.subr.mxu0 0.0
        %1252 = vmatpush1.msra.mxu0 0.0
        %1253 = vmatprep.subr.mxu0 0.0
        %1254 = vmatpush1.msra.mxu0 0.0
        %1255 = vmatprep.subr.mxu0 0.0
        %1256 = vmatpush1.msra.mxu0 0.0
        %1257 = vmatprep.subr.mxu0 0.0
        %1258 = vmatpush1.msra.mxu0 0.0
        %1259 = vmatprep.subr.mxu0 0.0
        %1260 = vmatpush1.msra.mxu0 0.0
        %1261 = vmatprep.subr.mxu0 0.0
        %1262 = vmatpush1.msra.mxu0 0.0
        %1263 = vmatprep.subr.mxu0 0.0
        %1264 = vmatpush1.msra.mxu0 0.0
        %1265 = vmatprep.subr.mxu0 0.0
        %1266 = vmatpush1.msra.mxu0 0.0
        %1267 = vmatprep.mubr.f32.mxu0 0.0
        %1268 = vmatmul.mubr.f32.gmra.mrb[0].mxu0 %v1201
        %v1269 = vpop.f32.mrb[0].mxu0
        %v1270 = vadd.f32 0.0, %v1269
        %v1271 = vpop.f32.mrb[0].mxu0
        %1272 = vdwg.mxu0
        %v1273 = vadd.f32 %v409, %v1270
        %v1274 = vld [vmem:[%s4] sm:$0x1]
        %v1275 = vld [vmem:[%s5] sm:$0x1]
        %v1276 = vsel %vm413, %v1273, 0.0
        %1277 = vadd.xlane.f32.xlu0 %v1276
        %v1278 = vpop.xlane.xlu0 %1277
        %v1279 = vmul.f32 %v1278, %v417
        %v1280 = vsub.f32 %v1273, %v1279
        %v1281 = vmul.f32 %v1280, %v1280
        %v1282 = vsel %vm413, %v1281, 0.0
        %1283 = vadd.xlane.f32.xlu0 %v1282
        %v1284 = vpop.xlane.xlu0 %1283
        %v1285 = vmul.f32 %v1284, %v417
        %v1286 = vadd.f32 %v1285, 1e-05
        %v1287 = vrsqrt.pop %v1286
        %v1288 = vmul.f32 %v1280, %v1287
        %v1290 = vlaneseq
        %v1291 = vshrl.u32 %v1290, 7
        %v1292 = vsub.s32 0, %v1291
        %v1293 = vrot.slane %v1274, %v1292
        %v1295 = vmul.f32 %v1288, %v1293
        %v1297 = vlaneseq
        %v1298 = vshrl.u32 %v1297, 7
        %v1299 = vsub.s32 0, %v1298
        %v1300 = vrot.slane %v1275, %v1299
        %v1302 = vadd.f32 %v1295, %v1300
        %v1303 = vld [vmem:[%s8] sm:$0xff]
        %v1304 = vld [vmem:[%s8 + $0x8] sm:$0xff]
        %v1305 = vld [vmem:[%s8 + $0x10] sm:$0xff]
        %v1306 = vld [vmem:[%s8 + $0x18] sm:$0xff]
        %v1307 = vld [vmem:[%s9] sm:$0x1]
        %v1309 = vlaneseq
        %v1310 = vshrl.u32 %v1309, 7
        %v1311 = vsub.s32 0, %v1310
        %v1312 = vrot.slane %v1307, %v1311
        %v1315 = vsel %vm413, %v1302, 0
        %1317 = vmatprep.subr.mxu0 0.0
        %1318 = vmatpush1.msra.mxu0 %v1303
        %1319 = vmatprep.subr.mxu0 0.0
        %1320 = vmatpush1.msra.mxu0 %v1304
        %1321 = vmatprep.subr.mxu0 0.0
        %1322 = vmatpush1.msra.mxu0 %v1305
        %1323 = vmatprep.subr.mxu0 0.0
        %1324 = vmatpush1.msra.mxu0 %v1306
        %1325 = vmatprep.subr.mxu0 0.0
        %1326 = vmatpush1.msra.mxu0 0.0
        %1327 = vmatprep.subr.mxu0 0.0
        %1328 = vmatpush1.msra.mxu0 0.0
        %1329 = vmatprep.subr.mxu0 0.0
        %1330 = vmatpush1.msra.mxu0 0.0
        %1331 = vmatprep.subr.mxu0 0.0
        %1332 = vmatpush1.msra.mxu0 0.0
        %1333 = vmatprep.subr.mxu0 0.0
        %1334 = vmatpush1.msra.mxu0 0.0
        %1335 = vmatprep.subr.mxu0 0.0
        %1336 = vmatpush1.msra.mxu0 0.0
        %1337 = vmatprep.subr.mxu0 0.0
        %1338 = vmatpush1.msra.mxu0 0.0
        %1339 = vmatprep.subr.mxu0 0.0
        %1340 = vmatpush1.msra.mxu0 0.0
        %1341 = vmatprep.subr.mxu0 0.0
        %1342 = vmatpush1.msra.mxu0 0.0
        %1343 = vmatprep.subr.mxu0 0.0
        %1344 = vmatpush1.msra.mxu0 0.0
        %1345 = vmatprep.subr.mxu0 0.0
        %1346 = vmatpush1.msra.mxu0 0.0
        %1347 = vmatprep.subr.mxu0 0.0
        %1348 = vmatpush1.msra.mxu0 0.0
        %1349 = vmatprep.subr.mxu0 0.0
        %1350 = vmatpush1.msra.mxu0 0.0
        %1351 = vmatprep.subr.mxu0 0.0
        %1352 = vmatpush1.msra.mxu0 0.0
        %1353 = vmatprep.subr.mxu0 0.0
        %1354 = vmatpush1.msra.mxu0 0.0
        %1355 = vmatprep.subr.mxu0 0.0
        %1356 = vmatpush1.msra.mxu0 0.0
        %1357 = vmatprep.subr.mxu0 0.0
        %1358 = vmatpush1.msra.mxu0 0.0
        %1359 = vmatprep.subr.mxu0 0.0
        %1360 = vmatpush1.msra.mxu0 0.0
        %1361 = vmatprep.subr.mxu0 0.0
        %1362 = vmatpush1.msra.mxu0 0.0
        %1363 = vmatprep.subr.mxu0 0.0
        %1364 = vmatpush1.msra.mxu0 0.0
        %1365 = vmatprep.subr.mxu0 0.0
        %1366 = vmatpush1.msra.mxu0 0.0
        %1367 = vmatprep.subr.mxu0 0.0
        %1368 = vmatpush1.msra.mxu0 0.0
        %1369 = vmatprep.subr.mxu0 0.0
        %1370 = vmatpush1.msra.mxu0 0.0
        %1371 = vmatprep.subr.mxu0 0.0
        %1372 = vmatpush1.msra.mxu0 0.0
        %1373 = vmatprep.subr.mxu0 0.0
        %1374 = vmatpush1.msra.mxu0 0.0
        %1375 = vmatprep.subr.mxu0 0.0
        %1376 = vmatpush1.msra.mxu0 0.0
        %1377 = vmatprep.subr.mxu0 0.0
        %1378 = vmatpush1.msra.mxu0 0.0
        %1379 = vmatprep.subr.mxu0 0.0
        %1380 = vmatpush1.msra.mxu0 0.0
        %1381 = vmatprep.mubr.f32.mxu0 0.0
        %1382 = vmatmul.mubr.f32.gmra.mrb[0].mxu0 %v1315
        %v1383 = vpop.f32.mrb[0].mxu0
        %v1384 = vadd.f32 %v1312, %v1383
        %v1385 = vpop.f32.mrb[0].mxu0
        %1386 = vdwg.mxu0
        %v1387 = vmul.f32 %v1384, 0.5
        %v1388 = vmul.f32 %v1384, 0.70710677
        %v1389 = verf.f32.pop %v1388
        %v1390 = vadd.f32 %v1389, 1.0
        %v1391 = vmul.f32 %v1387, %v1390
        %v1392 = vld [vmem:[%s10] sm:$0xff]
        %v1393 = vld [vmem:[%s10 + $0x8] sm:$0xff]
        %v1394 = vld [vmem:[%s10 + $0x10] sm:$0xff]
        %v1395 = vld [vmem:[%s10 + $0x18] sm:$0xff]
        %v1396 = vld [vmem:[%s10 + $0x20] sm:$0xff]
        %v1397 = vld [vmem:[%s10 + $0x28] sm:$0xff]
        %v1398 = vld [vmem:[%s10 + $0x30] sm:$0xff]
        %v1399 = vld [vmem:[%s10 + $0x38] sm:$0xff]
        %v1400 = vld [vmem:[%s10 + $0x40] sm:$0xff]
        %v1401 = vld [vmem:[%s10 + $0x48] sm:$0xff]
        %v1402 = vld [vmem:[%s10 + $0x50] sm:$0xff]
        %v1403 = vld [vmem:[%s10 + $0x58] sm:$0xff]
        %v1404 = vld [vmem:[%s10 + $0x60] sm:$0xff]
        %v1405 = vld [vmem:[%s10 + $0x68] sm:$0xff]
        %v1406 = vld [vmem:[%s10 + $0x70] sm:$0xff]
        %v1407 = vld [vmem:[%s10 + $0x78] sm:$0xff]
        %v1408 = vld [vmem:[%s11] sm:$0x1]
        %v1410 = vlaneseq
        %v1411 = vshrl.u32 %v1410, 7
        %v1412 = vsub.s32 0, %v1411
        %v1413 = vrot.slane %v1408, %v1412
        %1415 = vmatprep.subr.mxu0 0.0
        %1416 = vmatpush1.msra.mxu0 %v1392
        %1417 = vmatprep.subr.mxu0 0.0
        %1418 = vmatpush1.msra.mxu0 %v1393
        %1419 = vmatprep.subr.mxu0 0.0
        %1420 = vmatpush1.msra.mxu0 %v1394
        %1421 = vmatprep.subr.mxu0 0.0
        %1422 = vmatpush1.msra.mxu0 %v1395
        %1423 = vmatprep.subr.mxu0 0.0
        %1424 = vmatpush1.msra.mxu0 %v1396
        %1425 = vmatprep.subr.mxu0 0.0
        %1426 = vmatpush1.msra.mxu0 %v1397
        %1427 = vmatprep.subr.mxu0 0.0
        %1428 = vmatpush1.msra.mxu0 %v1398
        %1429 = vmatprep.subr.mxu0 0.0
        %1430 = vmatpush1.msra.mxu0 %v1399
        %1431 = vmatprep.subr.mxu0 0.0
        %1432 = vmatpush1.msra.mxu0 %v1400
        %1433 = vmatprep.subr.mxu0 0.0
        %1434 = vmatpush1.msra.mxu0 %v1401
        %1435 = vmatprep.subr.mxu0 0.0
        %1436 = vmatpush1.msra.mxu0 %v1402
        %1437 = vmatprep.subr.mxu0 0.0
        %1438 = vmatpush1.msra.mxu0 %v1403
        %1439 = vmatprep.subr.mxu0 0.0
        %1440 = vmatpush1.msra.mxu0 %v1404
        %1441 = vmatprep.subr.mxu0 0.0
        %1442 = vmatpush1.msra.mxu0 %v1405
        %1443 = vmatprep.subr.mxu0 0.0
        %1444 = vmatpush1.msra.mxu0 %v1406
        %1445 = vmatprep.subr.mxu0 0.0
        %1446 = vmatpush1.msra.mxu0 %v1407
        %1447 = vmatprep.subr.mxu0 0.0
        %1448 = vmatpush1.msra.mxu0 0.0
        %1449 = vmatprep.subr.mxu0 0.0
        %1450 = vmatpush1.msra.mxu0 0.0
        %1451 = vmatprep.subr.mxu0 0.0
        %1452 = vmatpush1.msra.mxu0 0.0
        %1453 = vmatprep.subr.mxu0 0.0
        %1454 = vmatpush1.msra.mxu0 0.0
        %1455 = vmatprep.subr.mxu0 0.0
        %1456 = vmatpush1.msra.mxu0 0.0
        %1457 = vmatprep.subr.mxu0 0.0
        %1458 = vmatpush1.msra.mxu0 0.0
        %1459 = vmatprep.subr.mxu0 0.0
        %1460 = vmatpush1.msra.mxu0 0.0
        %1461 = vmatprep.subr.mxu0 0.0
        %1462 = vmatpush1.msra.mxu0 0.0
        %1463 = vmatprep.subr.mxu0 0.0
        %1464 = vmatpush1.msra.mxu0 0.0
        %1465 = vmatprep.subr.mxu0 0.0
        %1466 = vmatpush1.msra.mxu0 0.0
        %1467 = vmatprep.subr.mxu0 0.0
        %1468 = vmatpush1.msra.mxu0 0.0
        %1469 = vmatprep.subr.mxu0 0.0
        %1470 = vmatpush1.msra.mxu0 0.0
        %1471 = vmatprep.subr.mxu0 0.0
        %1472 = vmatpush1.msra.mxu0 0.0
        %1473 = vmatprep.subr.mxu0 0.0
        %1474 = vmatpush1.msra.mxu0 0.0
        %1475 = vmatprep.subr.mxu0 0.0
        %1476 = vmatpush1.msra.mxu0 0.0
        %1477 = vmatprep.subr.mxu0 0.0
        %1478 = vmatpush1.msra.mxu0 0.0
        %1479 = vmatprep.mubr.f32.mxu0 0.0
        %1480 = vmatmul.mubr.f32.gmra.mrb[0].mxu0 %v1391
        %v1481 = vpop.f32.mrb[0].mxu0
        %v1482 = vadd.f32 %v1413, %v1481
        %v1483 = vpop.f32.mrb[0].mxu0
        %1484 = vdwg.mxu0
        %v1485 = vadd.f32 %v1273, %v1482
        %1486 = vst.msk [vmem:[%s404] sm:$0xff] %vm413, %v1485
        %s1487 = sand.u32 %s291, 1
        %s1488 = scalar_lea.sflag [#allocation3], %s1487
        %s1489 = sand.u32 %s291, 1
        %s1490 = smul.addr %s1489, 8
        %s1491 = scalar_lea.vmem [#allocation2], %s1490
        // Predicated region
        $region69: #{tpu_custom_call.1} parent=67 // pred_check
          %p1492 = pneg %p301
        $region70: #{tpu_custom_call.1} parent=67 // pred_check_branch
          %1494 = sbr.rel (%p1492) target = $region72
        $region71: #{tpu_custom_call.1} parent=67 // pred_region
          %s1496 = ssub.s32 128, 128
          %1497 = vsyncadd %s1488, %s1496
          %s1498 = smul.addr %s26, 128
          %s1499 = scalar_lea.hbm %s12, %s1498
          %s1501 = sshll.u32 %s1491, 4
          %s1502 = int_to_ptr.vmem [resolvable:$true] %s1501
          %1504 = dma.vmem_to_hbm [thread:$0]  %s1502, 128, %s1499, %s1488
        $region72: #{tpu_custom_call.1} parent=67 // pred_fallthru
          _
      $region68: #{tpu_custom_call.1} parent=5 // pred_fallthru
        _
      %p1505 = scmp.le.s32.totalorder 2, %s21
      // Predicated region
      $region73: #{tpu_custom_call.1} parent=5 // pred_check
        %p1506 = pneg %p1505
      $region74: #{tpu_custom_call.1} parent=5 // pred_check_branch
        %1508 = sbr.rel (%p1506) target = $region76
      $region75: #{tpu_custom_call.1} parent=5 // pred_region
        %s1509 = ssub.s32 %s21, 2
        // Predicated region
        $region77: #{tpu_custom_call.1} parent=75 // pred_check
          %p1510 = pneg %p307
        $region78: #{tpu_custom_call.1} parent=75 // pred_check_branch
          %1512 = sbr.rel (%p1510) target = $region80
        $region79: #{tpu_custom_call.1} parent=75 // pred_region
          %s1513 = sand.u32 %s292, 1
          %s1514 = scalar_lea.sflag [#allocation3], %s1513
          %s1515 = sand.u32 %s292, 1
          %s1516 = smul.addr %s1515, 8
          %s1517 = scalar_lea.vmem [#allocation2], %s1516
          %1518 = dma.done %s1514, 128
        $region80: #{tpu_custom_call.1} parent=75 // pred_fallthru
          _
      $region76: #{tpu_custom_call.1} parent=5 // pred_fallthru
        _
    $region6: #{tpu_custom_call.1} parent=1 // loop_footer
      %s25 = sadd.s32 1, %s21
    $region7: #{tpu_custom_call.1} parent=1 // loop_footer_branch
      %20 = sbr.rel target = $region3
    $region8: #{tpu_custom_call.1} parent=1 // loop_exit
      _
    %1519 = vsyncpa [#allocation3], 1
    %s1520 = scalar_lea.sflag [#allocation3], 1
    %1521 = vsyncpa %s1520, 1

</llo_original>
